<compile_context>
chip_gen: v7x
topology: tpu7x:2x2x1
jax: 0.10.0
libtpu: 0.0.40
codegen_flags: <defaults>
</compile_context>

<pallas_src>
import functools

import jax
import jax.numpy as jnp
import numpy as np
from jax.experimental import pallas as pl
from jax.experimental.pallas import tpu as pltpu

_HIGHEST = jax.lax.Precision.HIGHEST


def _silu(v):
    return v * jax.nn.sigmoid(v)


def _gate_kernel(x_ref, w1_ref, w2_ref, we1a_ref, we1b_ref, we2_ref,
                 pool_ref, bias_ref, out_ref, *, hw, precision):
    """One grid step = TB batch samples packed as a (C, TB*HW) lane-dense slab."""
    x = x_ref[...]                                           # (C, L), f32 or bf16
    C, L = x.shape
    tb = L // hw
    c4 = w1_ref.shape[0]
    c2 = we1a_ref.shape[0]
    E = we2_ref.shape[0]

    # packed small parameters (single VMEM tile instead of 4 tiny inputs)
    bias = bias_ref[...]                                     # (P, 4) f32
    b1 = bias[:c4, 0:1]                                      # conv1 bias (BN folded)
    b2 = bias[0:1, 1:2]                                      # conv2 bias
    be1 = bias[:c2, 2:3]                                     # linear1 bias
    be2 = bias[:E, 3:4]                                      # linear2 bias (1/T folded)

    # spatial gate: Conv2d(C, C//4, 1) [+folded eval-mode BN] -> SiLU
    #               -> Conv2d(C//4, 1, 1) -> Sigmoid
    h = jnp.dot(w1_ref[...], x, precision=precision,
                preferred_element_type=jnp.float32) + b1     # (c4, L) f32
    h = _silu(h)
    s = jnp.dot(w2_ref[...], h, precision=precision,
                preferred_element_type=jnp.float32) + b2     # (1, L) f32
    sw = jax.nn.sigmoid(s)
    xg = x * sw.astype(x.dtype)                              # (C, L), stays in x dtype

    # pooling (per review): avg pool = ONE MXU matmul against the resident
    # block-diagonal averaging matrix; max pool = ONE reshape + lane reduce.
    avg = jnp.dot(xg, pool_ref[...], precision=precision,
                  preferred_element_type=jnp.float32)        # (C, TB) f32
    mx = jnp.max(xg.reshape(C, tb, hw), axis=-1).astype(jnp.float32)  # (C, TB)

    # expert gate: Linear(2C, C//2) -> SiLU -> Dropout(identity)
    #              -> Linear(C//2, E) (1/T folded); we1 split -> no concatenate
    g1 = (jnp.dot(we1a_ref[...], avg, precision=precision,
                  preferred_element_type=jnp.float32)
          + jnp.dot(we1b_ref[...], mx, precision=precision,
                    preferred_element_type=jnp.float32) + be1)  # (c2, TB)
    g1 = _silu(g1)
    # TODO(synk): Dropout(0.2) is eval-mode identity here (deterministic forward).
    g = jnp.dot(we2_ref[...], g1, precision=precision,
                preferred_element_type=jnp.float32) + be2       # (E, TB)

    # softmax over experts, written lane-dense as one (TB, E) block
    gt = g.T                                                  # (TB, E)
    gt = gt - jnp.max(gt, axis=-1, keepdims=True)
    e = jnp.exp(gt)
    denom = jnp.sum(e, axis=-1, keepdims=True)
    if precision is None:
        p = e * pl.reciprocal(denom, approx=True)             # EUP slot (free vs VPU divide)
    else:
        p = e / denom                                         # exact path for validation
    out_ref[...] = p.astype(out_ref.dtype)


def _vmem_capacity_bytes():
    try:
        return int(pltpu.get_tpu_info().vmem_capacity_bytes)
    except Exception:
        return 64 << 20        # conservative fallback: v7x per-TensorCore VMEM


def _block_cost_bytes(tb, C, HW, c4, x_itemsize):
    """Rough per-grid-step VMEM footprint of one batch block (bytes)."""
    L = tb * HW
    return (2 * C * L * x_itemsize        # double-buffered x slab block
            + C * L * x_itemsize          # gated copy xg (same dtype as x)
            + (c4 + 3) * L * 4            # f32 h / s / sigmoid intermediates
            + 2 * L * tb * x_itemsize)    # resident averaging matrix (dbl-buffered)


def _choose_block_batch(B, C, HW, c4, x_itemsize, budget_bytes, min_steps=2):
    """Pick TB = samples per grid step (VMEM-byte aware, not lane-count based).

    TB must divide B and either equal B or keep the blocks tile-aligned
    (TB % 8 == 0 for the (TB, E) output block, TB*HW % 128 == 0 for the
    (C, TB*HW) x block).  Among aligned divisors, prefer the largest block
    whose estimated footprint fits `budget_bytes` while still leaving
    >= `min_steps` grid steps for DMA/compute pipelining.  Pass min_steps=4
    on v7x so each of its 2 TensorCores gets >= 2 pipelined iterations; 2 is
    plenty on single-TC v5e/v6e (extra steps only add ~0.35us each).
    """
    divisors = [d for d in range(1, B + 1) if B % d == 0]
    valid = [d for d in divisors if d == B or (d % 8 == 0 and (d * HW) % 128 == 0)]
    fits = [d for d in valid
            if _block_cost_bytes(d, C, HW, c4, x_itemsize) <= budget_bytes]
    pref = [d for d in fits if B // d >= min_steps]
    if pref:
        return max(pref)
    if fits:
        return max(fits)       # fewer steps; acceptable on 1-TC chips
    return min(valid)          # smallest legal block even if over budget


def init_params(key, in_dim, num_experts, temperature=0.1):
    c4 = in_dim // 4
    c2 = in_dim // 2
    ks = jax.random.split(key, 9)
    return {
        "w1": jax.random.normal(ks[0], (c4, in_dim), jnp.float32) * 0.1,
        "b1": jax.random.normal(ks[1], (c4,), jnp.float32) * 0.1,
        "bn_gamma": jnp.ones((c4,), jnp.float32),
        "bn_beta": jnp.zeros((c4,), jnp.float32),
        "bn_mean": jax.random.normal(ks[2], (c4,), jnp.float32) * 0.05,
        "bn_var": jnp.abs(jax.random.normal(ks[3], (c4,), jnp.float32)) * 0.1 + 1.0,
        "w2": jax.random.normal(ks[4], (1, c4), jnp.float32) * 0.1,
        "b2": jnp.zeros((1,), jnp.float32),
        "we1": jax.random.normal(ks[5], (c2, 2 * in_dim), jnp.float32) * 0.1,
        "be1": jax.random.normal(ks[6], (c2,), jnp.float32) * 0.1,
        "we2": jax.random.normal(ks[7], (num_experts, c2), jnp.float32) * 0.1,
        "be2": jax.random.normal(ks[8], (num_experts,), jnp.float32) * 0.1,
        "temperature": jnp.full((1,), temperature, jnp.float32),
    }


def gate_forward(x, params, training=True, *, x_dtype=jnp.float32,
                 block_batch=None, min_steps=2, precision=None):
    B, C, H, W = x.shape
    HW = H * W
    c4 = params["w1"].shape[0]
    c2 = params["we1"].shape[0]
    E = params["we2"].shape[0]
    eps = 1e-5
    x_itemsize = jnp.dtype(x_dtype).itemsize

    # ---- wrapper-side folds (free; remove in-kernel work & tiny inputs) ----
    bn_scale = params["bn_gamma"] / jnp.sqrt(params["bn_var"] + eps)   # eval-mode BN
    bn_bias = params["bn_beta"] - params["bn_mean"] * bn_scale
    w1f = (params["w1"] * bn_scale[:, None]).astype(x_dtype)           # bf16 if x is bf16
    b1f = params["b1"] * bn_scale + bn_bias
    if training:
        inv_t = 1.0 / params["temperature"][0]
        we2f = params["we2"] * inv_t
        be2f = params["be2"] * inv_t
    else:
        we2f, be2f = params["we2"], params["be2"]
    we1a = params["we1"][:, :C]          # avg-feature half
    we1b = params["we1"][:, C:]          # max-feature half

    # pack the small bias vectors into one VMEM tile: cols = [b1, b2, be1, be2]
    P = max(c4, c2, E, 1)
    bias_pack = jnp.zeros((P, 4), jnp.float32)
    bias_pack = bias_pack.at[:c4, 0].set(b1f)
    bias_pack = bias_pack.at[:1, 1].set(params["b2"])
    bias_pack = bias_pack.at[:c2, 2].set(params["be1"])
    bias_pack = bias_pack.at[:E, 3].set(be2f)

    # lane-dense slab: (C, B*HW); sample b occupies lanes [b*HW, (b+1)*HW)
    # TODO(synk): extra HBM pass; produce x upstream already in this layout.
    x2 = jnp.transpose(x.reshape(B, C, HW), (1, 0, 2)).reshape(C, B * HW)
    x2 = x2.astype(x_dtype)

    cap = _vmem_capacity_bytes()
    if block_batch is not None:
        TB = block_batch
    else:
        TB = _choose_block_batch(B, C, HW, c4, x_itemsize, cap // 8, min_steps)
    assert B % TB == 0, "block_batch must divide the batch size"
    grid = (B // TB,)
    L = TB * HW

    # block-diagonal averaging matrix: pool[l, t] = 1/HW on sample t's lanes
    pool = ((jnp.arange(L)[:, None] // HW) == jnp.arange(TB)[None, :])
    pool = pool.astype(x_dtype) * jnp.asarray(1.0 / HW, x_dtype)

    # explicit scoped-VMEM limit sized from the chosen blocks (with headroom),
    # clamped to 75% of physical VMEM (<= ~48 MiB on v7x, <= 96 MiB on v5e/v6e)
    weight_bytes = (w1f.size * x_itemsize + pool.size * x_itemsize
                    + 4 * (params["w2"].size + we1a.size + we1b.size
                           + we2f.size + bias_pack.size))
    vmem_limit = int(1.25 * (_block_cost_bytes(TB, C, HW, c4, x_itemsize)
                             + 2 * weight_bytes)) + (8 << 20)
    vmem_limit = max(vmem_limit, 32 << 20)
    vmem_limit = min(vmem_limit, int(0.75 * cap))

    kernel = functools.partial(_gate_kernel, hw=HW, precision=precision)

    def resident(shape):
        # Constant index map -> block stays resident across grid steps.
        # TODO(synk): pipeline_mode=pl.Buffered(1) would drop the redundant
        # second buffer for these constant-index weights on VMEM-tight chips.
        return pl.BlockSpec(shape, lambda b: (0, 0))

    out = pl.pallas_call(
        kernel,
        out_shape=jax.ShapeDtypeStruct((B, E), jnp.float32),
        grid=grid,
        in_specs=[
            pl.BlockSpec((C, L), lambda b: (0, b)),   # x slab block
            resident((c4, C)),                        # conv1 weight (BN folded)
            resident((1, c4)),                        # conv2 weight
            resident((c2, C)),                        # linear1 weight, avg half
            resident((c2, C)),                        # linear1 weight, max half
            resident((E, c2)),                        # linear2 weight (1/T folded)
            resident((L, TB)),                        # block-diagonal avg-pool matrix
            resident((P, 4)),                         # packed biases
        ],
        out_specs=pl.BlockSpec((TB, E), lambda b: (b, 0)),
        compiler_params=pltpu.CompilerParams(
            dimension_semantics=("parallel",),
            vmem_limit_bytes=vmem_limit),
    )(x2, w1f, params["w2"], we1a, we1b, we2f, pool, bias_pack)
    return out


def gate_reference(x, params, training=True):
    """Pure-JAX reference mirroring the PyTorch forward (eval-mode BN/dropout)."""
    eps = 1e-5
    B, C, H, W = x.shape
    xf = x.reshape(B, C, H * W).astype(jnp.float32)
    h = jnp.einsum("oc,bcl->bol", params["w1"], xf,
                   precision=_HIGHEST) + params["b1"][None, :, None]
    scale = params["bn_gamma"] / jnp.sqrt(params["bn_var"] + eps)
    bias = params["bn_beta"] - params["bn_mean"] * scale
    h = h * scale[None, :, None] + bias[None, :, None]
    h = h * jax.nn.sigmoid(h)
    s = jnp.einsum("oc,bcl->bol", params["w2"], h,
                   precision=_HIGHEST) + params["b2"][None, :, None]
    xg = xf * jax.nn.sigmoid(s)
    avg = xg.mean(-1)
    mx = xg.max(-1)
    comb = jnp.concatenate([avg, mx], axis=1)
    g1 = jnp.dot(comb, params["we1"].T, precision=_HIGHEST) + params["be1"]
    g1 = g1 * jax.nn.sigmoid(g1)
    g = jnp.dot(g1, params["we2"].T, precision=_HIGHEST) + params["be2"]
    if training:
        g = g / params["temperature"]
    return jax.nn.softmax(g, axis=1)


if __name__ == "__main__":
    key = jax.random.PRNGKey(0)
    kx, kp = jax.random.split(key)

    B, C, H, W = 16, 16, 8, 8
    num_experts = 4

    x = jax.random.normal(kx, (B, C, H, W), jnp.float32)
    params = init_params(kp, C, num_experts, temperature=0.1)

    ref = gate_reference(x, params, training=True)

    # Fast path: default (single-pass bf16) MXU precision + EUP approx reciprocal.
    out = jax.block_until_ready(gate_forward(x, params, training=True))
    np.testing.assert_allclose(np.asarray(out), np.asarray(ref), rtol=5e-2, atol=3e-2)
    np.testing.assert_allclose(np.asarray(out).sum(axis=1), np.ones(B), atol=5e-3)

    # Validation path: HIGHEST matmul precision + exact divide -> tight check.
    out_hi = jax.block_until_ready(
        gate_forward(x, params, training=True, precision=_HIGHEST))
    np.testing.assert_allclose(np.asarray(out_hi), np.asarray(ref), rtol=2e-4, atol=2e-5)

    # bf16 x path (halves HBM traffic for the dominant x stream); compare
    # against the reference fed the same bf16-quantized input.
    out_bf16 = jax.block_until_ready(
        gate_forward(x, params, training=True, x_dtype=jnp.bfloat16))
    x_q = x.astype(jnp.bfloat16).astype(jnp.float32)
    ref_q = gate_reference(x_q, params, training=True)
    np.testing.assert_allclose(np.asarray(out_bf16), np.asarray(ref_q), rtol=5e-2, atol=4e-2)

    # eval path (no temperature scaling), tight check.
    out_eval = jax.block_until_ready(
        gate_forward(x, params, training=False, precision=_HIGHEST))
    ref_eval = gate_reference(x, params, training=False)
    np.testing.assert_allclose(np.asarray(out_eval), np.asarray(ref_eval), rtol=2e-4, atol=2e-5)

    print("KERNEL_OK")
</pallas_src>

<mosaic_0001>
module attributes {stable_mosaic.version = 11 : i64} {
  func.func @_gate_kernel(%arg0: i32, %arg1: memref<16x512xf32, #tpu.memory_space<vmem>>, %arg2: memref<4x16xf32, #tpu.memory_space<vmem>>, %arg3: memref<1x4xf32, #tpu.memory_space<vmem>>, %arg4: memref<8x16xf32, #tpu.memory_space<vmem>>, %arg5: memref<8x16xf32, #tpu.memory_space<vmem>>, %arg6: memref<4x8xf32, #tpu.memory_space<vmem>>, %arg7: memref<512x8xf32, #tpu.memory_space<vmem>>, %arg8: memref<8x4xf32, #tpu.memory_space<vmem>>, %arg9: memref<8x4xf32, #tpu.memory_space<vmem>>) attributes {dimension_semantics = [#tpu.dimension_semantics<parallel>], iteration_bounds = array<i64: 2>, scalar_prefetch = 0 : i64, scratch_operands = 0 : i64, tpu.core_type = #tpu.core_type<tc>, window_params = [{transform_indices = @transform_0, window_bounds = array<i64: 16, 512>}, {pipeline_mode = #tpu.pipeline_mode<synchronous>, transform_indices = @transform_1, window_bounds = array<i64: 4, 16>}, {pipeline_mode = #tpu.pipeline_mode<synchronous>, transform_indices = @transform_2, window_bounds = array<i64: 1, 4>}, {pipeline_mode = #tpu.pipeline_mode<synchronous>, transform_indices = @transform_3, window_bounds = array<i64: 8, 16>}, {pipeline_mode = #tpu.pipeline_mode<synchronous>, transform_indices = @transform_4, window_bounds = array<i64: 8, 16>}, {pipeline_mode = #tpu.pipeline_mode<synchronous>, transform_indices = @transform_5, window_bounds = array<i64: 4, 8>}, {pipeline_mode = #tpu.pipeline_mode<synchronous>, transform_indices = @transform_6, window_bounds = array<i64: 512, 8>}, {pipeline_mode = #tpu.pipeline_mode<synchronous>, transform_indices = @transform_7, window_bounds = array<i64: 8, 4>}, {transform_indices = @transform_8, window_bounds = array<i64: 8, 4>}]} {
    %c0 = arith.constant 0 : index
    %c0_0 = arith.constant 0 : index
    %0 = vector.load %arg1[%c0, %c0_0] : memref<16x512xf32, #tpu.memory_space<vmem>>, vector<16x512xf32>
    %c0_1 = arith.constant 0 : index
    %c0_2 = arith.constant 0 : index
    %1 = vector.load %arg8[%c0_1, %c0_2] : memref<8x4xf32, #tpu.memory_space<vmem>>, vector<8x4xf32>
    %2 = vector.extract_strided_slice %1 {offsets = [0, 0], sizes = [4, 1], strides = [1, 1]} : vector<8x4xf32> to vector<4x1xf32>
    %3 = vector.extract_strided_slice %1 {offsets = [0, 1], sizes = [1, 1], strides = [1, 1]} : vector<8x4xf32> to vector<1x1xf32>
    %4 = vector.extract_strided_slice %1 {offsets = [0, 2], sizes = [8, 1], strides = [1, 1]} : vector<8x4xf32> to vector<8x1xf32>
    %5 = vector.extract_strided_slice %1 {offsets = [0, 3], sizes = [4, 1], strides = [1, 1]} : vector<8x4xf32> to vector<4x1xf32>
    %c0_3 = arith.constant 0 : index
    %c0_4 = arith.constant 0 : index
    %6 = vector.load %arg2[%c0_3, %c0_4] : memref<4x16xf32, #tpu.memory_space<vmem>>, vector<4x16xf32>
    %cst = arith.constant dense<0.000000e+00> : vector<4x512xf32>
    %7 = tpu.matmul %6, %0, %cst {dimension_numbers = #tpu.dot_dimension_numbers<[1], [0], [0], [1], [0, 0, 1, 1], [], []>} : vector<4x16xf32>, vector<16x512xf32>, vector<4x512xf32> -> vector<4x512xf32>
    %8 = vector.broadcast %2 : vector<4x1xf32> to vector<4x512xf32>
    %9 = arith.addf %7, %8 : vector<4x512xf32>
    %10 = arith.negf %9 : vector<4x512xf32>
    %11 = math.exp %10 : vector<4x512xf32>
    %cst_5 = arith.constant 1.000000e+00 : f32
    %12 = vector.broadcast %cst_5 : f32 to vector<4x512xf32>
    %13 = arith.addf %12, %11 : vector<4x512xf32>
    %14 = arith.divf %12, %13 : vector<4x512xf32>
    %15 = arith.mulf %9, %14 : vector<4x512xf32>
    %c0_6 = arith.constant 0 : index
    %c0_7 = arith.constant 0 : index
    %16 = vector.load %arg3[%c0_6, %c0_7] : memref<1x4xf32, #tpu.memory_space<vmem>>, vector<1x4xf32>
    %cst_8 = arith.constant dense<0.000000e+00> : vector<1x512xf32>
    %17 = tpu.matmul %16, %15, %cst_8 {dimension_numbers = #tpu.dot_dimension_numbers<[1], [0], [0], [1], [0, 0, 1, 1], [], []>} : vector<1x4xf32>, vector<4x512xf32>, vector<1x512xf32> -> vector<1x512xf32>
    %18 = vector.broadcast %3 : vector<1x1xf32> to vector<1x512xf32>
    %19 = arith.addf %17, %18 : vector<1x512xf32>
    %20 = arith.negf %19 : vector<1x512xf32>
    %21 = math.exp %20 : vector<1x512xf32>
    %cst_9 = arith.constant 1.000000e+00 : f32
    %22 = vector.broadcast %cst_9 : f32 to vector<1x512xf32>
    %23 = arith.addf %22, %21 : vector<1x512xf32>
    %24 = arith.divf %22, %23 : vector<1x512xf32>
    %25 = vector.broadcast %24 : vector<1x512xf32> to vector<16x512xf32>
    %26 = arith.mulf %0, %25 : vector<16x512xf32>
    %c0_10 = arith.constant 0 : index
    %c0_11 = arith.constant 0 : index
    %27 = vector.load %arg7[%c0_10, %c0_11] : memref<512x8xf32, #tpu.memory_space<vmem>>, vector<512x8xf32>
    %cst_12 = arith.constant dense<0.000000e+00> : vector<16x8xf32>
    %28 = tpu.matmul %26, %27, %cst_12 {dimension_numbers = #tpu.dot_dimension_numbers<[1], [0], [0], [1], [0, 0, 1, 1], [], []>} : vector<16x512xf32>, vector<512x8xf32>, vector<16x8xf32> -> vector<16x8xf32>
    %29 = vector.shape_cast %26 : vector<16x512xf32> to vector<16x8x64xf32>
    %cst_13 = arith.constant dense<0xFF800000> : vector<16x8xf32>
    %30 = vector.multi_reduction <maximumf>, %29, %cst_13 [2] : vector<16x8x64xf32> to vector<16x8xf32>
    %c0_14 = arith.constant 0 : index
    %c0_15 = arith.constant 0 : index
    %31 = vector.load %arg4[%c0_14, %c0_15] : memref<8x16xf32, #tpu.memory_space<vmem>>, vector<8x16xf32>
    %cst_16 = arith.constant dense<0.000000e+00> : vector<8x8xf32>
    %32 = tpu.matmul %31, %28, %cst_16 {dimension_numbers = #tpu.dot_dimension_numbers<[1], [0], [0], [1], [0, 0, 1, 1], [], []>} : vector<8x16xf32>, vector<16x8xf32>, vector<8x8xf32> -> vector<8x8xf32>
    %c0_17 = arith.constant 0 : index
    %c0_18 = arith.constant 0 : index
    %33 = vector.load %arg5[%c0_17, %c0_18] : memref<8x16xf32, #tpu.memory_space<vmem>>, vector<8x16xf32>
    %cst_19 = arith.constant dense<0.000000e+00> : vector<8x8xf32>
    %34 = tpu.matmul %33, %30, %cst_19 {dimension_numbers = #tpu.dot_dimension_numbers<[1], [0], [0], [1], [0, 0, 1, 1], [], []>} : vector<8x16xf32>, vector<16x8xf32>, vector<8x8xf32> -> vector<8x8xf32>
    %35 = arith.addf %32, %34 : vector<8x8xf32>
    %36 = vector.broadcast %4 : vector<8x1xf32> to vector<8x8xf32>
    %37 = arith.addf %35, %36 : vector<8x8xf32>
    %38 = arith.negf %37 : vector<8x8xf32>
    %39 = math.exp %38 : vector<8x8xf32>
    %cst_20 = arith.constant 1.000000e+00 : f32
    %40 = vector.broadcast %cst_20 : f32 to vector<8x8xf32>
    %41 = arith.addf %40, %39 : vector<8x8xf32>
    %42 = arith.divf %40, %41 : vector<8x8xf32>
    %43 = arith.mulf %37, %42 : vector<8x8xf32>
    %c0_21 = arith.constant 0 : index
    %c0_22 = arith.constant 0 : index
    %44 = vector.load %arg6[%c0_21, %c0_22] : memref<4x8xf32, #tpu.memory_space<vmem>>, vector<4x8xf32>
    %cst_23 = arith.constant dense<0.000000e+00> : vector<4x8xf32>
    %45 = tpu.matmul %44, %43, %cst_23 {dimension_numbers = #tpu.dot_dimension_numbers<[1], [0], [0], [1], [0, 0, 1, 1], [], []>} : vector<4x8xf32>, vector<8x8xf32>, vector<4x8xf32> -> vector<4x8xf32>
    %46 = vector.broadcast %5 : vector<4x1xf32> to vector<4x8xf32>
    %47 = arith.addf %45, %46 : vector<4x8xf32>
    %48 = tpu.transpose %47, [1, 0] : vector<4x8xf32> -> vector<8x4xf32>
    %cst_24 = arith.constant dense<0xFF800000> : vector<8xf32>
    %49 = vector.multi_reduction <maximumf>, %48, %cst_24 [1] : vector<8x4xf32> to vector<8xf32>
    %50 = vector.shape_cast %49 : vector<8xf32> to vector<8x1xf32>
    %51 = vector.broadcast %50 : vector<8x1xf32> to vector<8x4xf32>
    %52 = arith.subf %48, %51 : vector<8x4xf32>
    %53 = math.exp %52 : vector<8x4xf32>
    %cst_25 = arith.constant dense<0.000000e+00> : vector<8xf32>
    %54 = vector.multi_reduction <add>, %53, %cst_25 [1] : vector<8x4xf32> to vector<8xf32>
    %55 = vector.shape_cast %54 : vector<8xf32> to vector<8x1xf32>
    %56 = tpu.reciprocal %55 {approx = true} : vector<8x1xf32> -> vector<8x1xf32>
    %57 = vector.broadcast %56 : vector<8x1xf32> to vector<8x4xf32>
    %58 = arith.mulf %53, %57 : vector<8x4xf32>
    %c0_26 = arith.constant 0 : index
    %c0_27 = arith.constant 0 : index
    %59 = vector.load %arg9[%c0_26, %c0_27] : memref<8x4xf32, #tpu.memory_space<vmem>>, vector<8x4xf32>
    tpu.vector_store %arg9[%c0_26, %c0_27], %58 {strides = array<i32>} : memref<8x4xf32, #tpu.memory_space<vmem>>, vector<8x4xf32>,
    return
  }
  func.func @transform_0(%arg0: i32) -> (i32, i32) {
    %c0_i32 = arith.constant 0 : i32
    %c0_i32_0 = arith.constant 0 : i32
    return %c0_i32, %arg0 : i32, i32
  }
  func.func @transform_1(%arg0: i32) -> (i32, i32) {
    %c0_i32 = arith.constant 0 : i32
    %c0_i32_0 = arith.constant 0 : i32
    %c0_i32_1 = arith.constant 0 : i32
    return %c0_i32, %c0_i32_0 : i32, i32
  }
  func.func @transform_2(%arg0: i32) -> (i32, i32) {
    %c0_i32 = arith.constant 0 : i32
    %c0_i32_0 = arith.constant 0 : i32
    %c0_i32_1 = arith.constant 0 : i32
    return %c0_i32, %c0_i32_0 : i32, i32
  }
  func.func @transform_3(%arg0: i32) -> (i32, i32) {
    %c0_i32 = arith.constant 0 : i32
    %c0_i32_0 = arith.constant 0 : i32
    %c0_i32_1 = arith.constant 0 : i32
    return %c0_i32, %c0_i32_0 : i32, i32
  }
  func.func @transform_4(%arg0: i32) -> (i32, i32) {
    %c0_i32 = arith.constant 0 : i32
    %c0_i32_0 = arith.constant 0 : i32
    %c0_i32_1 = arith.constant 0 : i32
    return %c0_i32, %c0_i32_0 : i32, i32
  }
  func.func @transform_5(%arg0: i32) -> (i32, i32) {
    %c0_i32 = arith.constant 0 : i32
    %c0_i32_0 = arith.constant 0 : i32
    %c0_i32_1 = arith.constant 0 : i32
    return %c0_i32, %c0_i32_0 : i32, i32
  }
  func.func @transform_6(%arg0: i32) -> (i32, i32) {
    %c0_i32 = arith.constant 0 : i32
    %c0_i32_0 = arith.constant 0 : i32
    %c0_i32_1 = arith.constant 0 : i32
    return %c0_i32, %c0_i32_0 : i32, i32
  }
  func.func @transform_7(%arg0: i32) -> (i32, i32) {
    %c0_i32 = arith.constant 0 : i32
    %c0_i32_0 = arith.constant 0 : i32
    %c0_i32_1 = arith.constant 0 : i32
    return %c0_i32, %c0_i32_0 : i32, i32
  }
  func.func @transform_8(%arg0: i32) -> (i32, i32) {
    %c0_i32 = arith.constant 0 : i32
    %c0_i32_0 = arith.constant 0 : i32
    return %arg0, %c0_i32 : i32, i32
  }
}

</mosaic_0001>

<llo_original>
// kernel: tpu_custom_call.1
$region0: #{tpu_custom_call.1}
  #allocation0 [shape = 'u32[]', space=smem, size = 0x4, offset = 0x4, fixed_abs, tag = 'smem constant byte address 0x4 - core index']
  #allocation1 [shape = 'u32[144,128]{1,0:T(1,128)}', space=vmem, size = 0x12000, scoped, tag = 'internal scratch']
  %s0 = inlined_call_operand.vmem [shape: f32[16,1024], index: 0, kind: input, shape index: {}]
  %s1 = inlined_call_operand.vmem [shape: f32[4,16], index: 1, kind: input, shape index: {}]
  %s2 = inlined_call_operand.vmem [shape: f32[1,4], index: 2, kind: input, shape index: {}]
  %s3 = inlined_call_operand.vmem [shape: f32[8,16], index: 3, kind: input, shape index: {}]
  %s4 = inlined_call_operand.vmem [shape: f32[8,16], index: 4, kind: input, shape index: {}]
  %s5 = inlined_call_operand.vmem [shape: f32[4,8], index: 5, kind: input, shape index: {}]
  %s6 = inlined_call_operand.vmem [shape: f32[512,8], index: 6, kind: input, shape index: {}]
  %s7 = inlined_call_operand.vmem [shape: f32[8,4], index: 7, kind: input, shape index: {}]
  %s8 = inlined_call_operand.vmem [shape: f32[16,4], index: 8, kind: output, shape index: {}]
  %s9 = sld [smem:[#allocation0]]
  $region88: #{tpu_custom_call.1} parent=0
    _
  %s11 = ssub.s32 1, %s9
  %s12 = scalar_select 0, %s11, %s9
  $region1: #{tpu_custom_call.1} parent=0
    #allocation2 [shape = 'u8[65536]{0}', space=vmem, size = 0x10000, scoped, tag = 'input window, operand 0']
    loop: start=0, step=1, limit=4
    $region2: #{tpu_custom_call.1} parent=1 // loop_pre_header
      _
    $region3: #{tpu_custom_call.1} parent=1 // loop_header
      %s14 = sphi 0, %s18
      %p15 = scmp.ge.s32.totalorder %s14, 4
      %s24 = sphi 0, %s26
      %s27 = sphi 0, %s24
      %s28 = sphi 0, %s27
      %s44 = sphi 0, %s28
      %s48 = sphi 0, %s48
      %s50 = sphi 0, %s48
      %s51 = sphi 0, %s50
      %s65 = sphi 0, %s51
      %s69 = sphi 0, %s69
      %s71 = sphi 0, %s69
      %s72 = sphi 0, %s71
      %s86 = sphi 0, %s72
      %s90 = sphi 0, %s90
      %s92 = sphi 0, %s90
      %s93 = sphi 0, %s92
      %s107 = sphi 0, %s93
      %s111 = sphi 0, %s111
      %s113 = sphi 0, %s111
      %s114 = sphi 0, %s113
      %s128 = sphi 0, %s114
      %s132 = sphi 0, %s132
      %s134 = sphi 0, %s132
      %s135 = sphi 0, %s134
      %s149 = sphi 0, %s135
      %s153 = sphi 0, %s153
      %s155 = sphi 0, %s153
      %s156 = sphi 0, %s155
      %s170 = sphi 0, %s156
      %s174 = sphi 0, %s174
      %s176 = sphi 0, %s174
      %s177 = sphi 0, %s176
      %s191 = sphi 0, %s177
      %s197 = sphi 0, %s199
      %s200 = sphi 0, %s197
      %s201 = sphi 0, %s200
      %s217 = sphi 0, %s201
    $region4: #{tpu_custom_call.1} parent=1 // loop_header_branch
      %17 = sbr.rel (%p15) target = $region8
    $region5: #{tpu_custom_call.1} parent=1 // loop_body
      %s19 = ssub.s32 %s14, 1
      %s20 = ssub.s32 %s14, 2
      %s21 = sadd.s32 %s14, 1
      %s22 = ssub.s32 %s14, %s21
      %p23 = scmp.eq.s32.totalorder %s22, 0
      %s25 = sadd.s32 %s24, 1
      %s26 = scalar_select %p23, %s24, %s25
      %p29 = pneg %p23
      %p30 = scmp.eq.s32.totalorder %s14, 1
      %p31 = por %p29, %p30
      %p32 = scmp.ne.s32.totalorder %s24, %s27
      %p33 = scmp.eq.s32.totalorder %s14, 0
      %p34 = por %p32, %p33
      %p35 = scmp.ne.s32.totalorder %s24, %s27
      %p36 = scmp.eq.s32.totalorder %s19, 1
      %p37 = por %p35, %p36
      %p38 = scmp.ne.s32.totalorder %s27, %s28
      %p39 = scmp.eq.s32.totalorder %s19, 0
      %p40 = por %p38, %p39
      %p41 = scmp.ne.s32.totalorder %s27, %s28
      %p42 = scmp.eq.s32.totalorder %s20, 1
      %p43 = por %p41, %p42
      %p45 = scmp.ne.s32.totalorder %s28, %s44
      %p46 = scmp.eq.s32.totalorder %s20, 0
      %p47 = por %p45, %p46
      %s49 = sadd.s32 %s48, 1
      %p52 = scmp.eq.s32.totalorder %s14, 1
      %p53 = scmp.ne.s32.totalorder %s48, %s50
      %p54 = scmp.eq.s32.totalorder %s14, 0
      %p55 = por %p53, %p54
      %p56 = scmp.ne.s32.totalorder %s48, %s50
      %p57 = scmp.eq.s32.totalorder %s19, 1
      %p58 = por %p56, %p57
      %p59 = scmp.ne.s32.totalorder %s50, %s51
      %p60 = scmp.eq.s32.totalorder %s19, 0
      %p61 = por %p59, %p60
      %p62 = scmp.ne.s32.totalorder %s50, %s51
      %p63 = scmp.eq.s32.totalorder %s20, 1
      %p64 = por %p62, %p63
      %p66 = scmp.ne.s32.totalorder %s51, %s65
      %p67 = scmp.eq.s32.totalorder %s20, 0
      %p68 = por %p66, %p67
      %s70 = sadd.s32 %s69, 1
      %p73 = scmp.eq.s32.totalorder %s14, 1
      %p74 = scmp.ne.s32.totalorder %s69, %s71
      %p75 = scmp.eq.s32.totalorder %s14, 0
      %p76 = por %p74, %p75
      %p77 = scmp.ne.s32.totalorder %s69, %s71
      %p78 = scmp.eq.s32.totalorder %s19, 1
      %p79 = por %p77, %p78
      %p80 = scmp.ne.s32.totalorder %s71, %s72
      %p81 = scmp.eq.s32.totalorder %s19, 0
      %p82 = por %p80, %p81
      %p83 = scmp.ne.s32.totalorder %s71, %s72
      %p84 = scmp.eq.s32.totalorder %s20, 1
      %p85 = por %p83, %p84
      %p87 = scmp.ne.s32.totalorder %s72, %s86
      %p88 = scmp.eq.s32.totalorder %s20, 0
      %p89 = por %p87, %p88
      %s91 = sadd.s32 %s90, 1
      %p94 = scmp.eq.s32.totalorder %s14, 1
      %p95 = scmp.ne.s32.totalorder %s90, %s92
      %p96 = scmp.eq.s32.totalorder %s14, 0
      %p97 = por %p95, %p96
      %p98 = scmp.ne.s32.totalorder %s90, %s92
      %p99 = scmp.eq.s32.totalorder %s19, 1
      %p100 = por %p98, %p99
      %p101 = scmp.ne.s32.totalorder %s92, %s93
      %p102 = scmp.eq.s32.totalorder %s19, 0
      %p103 = por %p101, %p102
      %p104 = scmp.ne.s32.totalorder %s92, %s93
      %p105 = scmp.eq.s32.totalorder %s20, 1
      %p106 = por %p104, %p105
      %p108 = scmp.ne.s32.totalorder %s93, %s107
      %p109 = scmp.eq.s32.totalorder %s20, 0
      %p110 = por %p108, %p109
      %s112 = sadd.s32 %s111, 1
      %p115 = scmp.eq.s32.totalorder %s14, 1
      %p116 = scmp.ne.s32.totalorder %s111, %s113
      %p117 = scmp.eq.s32.totalorder %s14, 0
      %p118 = por %p116, %p117
      %p119 = scmp.ne.s32.totalorder %s111, %s113
      %p120 = scmp.eq.s32.totalorder %s19, 1
      %p121 = por %p119, %p120
      %p122 = scmp.ne.s32.totalorder %s113, %s114
      %p123 = scmp.eq.s32.totalorder %s19, 0
      %p124 = por %p122, %p123
      %p125 = scmp.ne.s32.totalorder %s113, %s114
      %p126 = scmp.eq.s32.totalorder %s20, 1
      %p127 = por %p125, %p126
      %p129 = scmp.ne.s32.totalorder %s114, %s128
      %p130 = scmp.eq.s32.totalorder %s20, 0
      %p131 = por %p129, %p130
      %s133 = sadd.s32 %s132, 1
      %p136 = scmp.eq.s32.totalorder %s14, 1
      %p137 = scmp.ne.s32.totalorder %s132, %s134
      %p138 = scmp.eq.s32.totalorder %s14, 0
      %p139 = por %p137, %p138
      %p140 = scmp.ne.s32.totalorder %s132, %s134
      %p141 = scmp.eq.s32.totalorder %s19, 1
      %p142 = por %p140, %p141
      %p143 = scmp.ne.s32.totalorder %s134, %s135
      %p144 = scmp.eq.s32.totalorder %s19, 0
      %p145 = por %p143, %p144
      %p146 = scmp.ne.s32.totalorder %s134, %s135
      %p147 = scmp.eq.s32.totalorder %s20, 1
      %p148 = por %p146, %p147
      %p150 = scmp.ne.s32.totalorder %s135, %s149
      %p151 = scmp.eq.s32.totalorder %s20, 0
      %p152 = por %p150, %p151
      %s154 = sadd.s32 %s153, 1
      %p157 = scmp.eq.s32.totalorder %s14, 1
      %p158 = scmp.ne.s32.totalorder %s153, %s155
      %p159 = scmp.eq.s32.totalorder %s14, 0
      %p160 = por %p158, %p159
      %p161 = scmp.ne.s32.totalorder %s153, %s155
      %p162 = scmp.eq.s32.totalorder %s19, 1
      %p163 = por %p161, %p162
      %p164 = scmp.ne.s32.totalorder %s155, %s156
      %p165 = scmp.eq.s32.totalorder %s19, 0
      %p166 = por %p164, %p165
      %p167 = scmp.ne.s32.totalorder %s155, %s156
      %p168 = scmp.eq.s32.totalorder %s20, 1
      %p169 = por %p167, %p168
      %p171 = scmp.ne.s32.totalorder %s156, %s170
      %p172 = scmp.eq.s32.totalorder %s20, 0
      %p173 = por %p171, %p172
      %s175 = sadd.s32 %s174, 1
      %p178 = scmp.eq.s32.totalorder %s14, 1
      %p179 = scmp.ne.s32.totalorder %s174, %s176
      %p180 = scmp.eq.s32.totalorder %s14, 0
      %p181 = por %p179, %p180
      %p182 = scmp.ne.s32.totalorder %s174, %s176
      %p183 = scmp.eq.s32.totalorder %s19, 1
      %p184 = por %p182, %p183
      %p185 = scmp.ne.s32.totalorder %s176, %s177
      %p186 = scmp.eq.s32.totalorder %s19, 0
      %p187 = por %p185, %p186
      %p188 = scmp.ne.s32.totalorder %s176, %s177
      %p189 = scmp.eq.s32.totalorder %s20, 1
      %p190 = por %p188, %p189
      %p192 = scmp.ne.s32.totalorder %s177, %s191
      %p193 = scmp.eq.s32.totalorder %s20, 0
      %p194 = por %p192, %p193
      %s195 = ssub.s32 %s14, %s21
      %p196 = scmp.eq.s32.totalorder %s195, 0
      %s198 = sadd.s32 %s197, 1
      %s199 = scalar_select %p196, %s197, %s198
      %p202 = pneg %p196
      %p203 = scmp.eq.s32.totalorder %s14, 1
      %p204 = por %p202, %p203
      %p205 = scmp.ne.s32.totalorder %s197, %s200
      %p206 = scmp.eq.s32.totalorder %s14, 0
      %p207 = por %p205, %p206
      %p208 = scmp.ne.s32.totalorder %s197, %s200
      %p209 = scmp.eq.s32.totalorder %s19, 1
      %p210 = por %p208, %p209
      %p211 = scmp.ne.s32.totalorder %s200, %s201
      %p212 = scmp.eq.s32.totalorder %s19, 0
      %p213 = por %p211, %p212
      %p214 = scmp.ne.s32.totalorder %s200, %s201
      %p215 = scmp.eq.s32.totalorder %s20, 1
      %p216 = por %p214, %p215
      %p218 = scmp.ne.s32.totalorder %s201, %s217
      %p219 = scmp.eq.s32.totalorder %s20, 0
      %p220 = por %p218, %p219
      %p221 = scmp.le.s32.totalorder 1, %s14
      %p222 = scmp.lt.s32.totalorder %s14, 3
      %p223 = pnand %p221, %p222
      %p224 = pneg %p223
      // Predicated region
      $region9: #{tpu_custom_call.1} parent=5 // pred_check
        _
      $region10: #{tpu_custom_call.1} parent=5 // pred_check_branch
        %226 = sbr.rel (%p223) target = $region12
      $region11: #{tpu_custom_call.1} parent=5 // pred_region
        %s227 = ssub.s32 %s14, 1
        // Predicated region
        $region13: #{tpu_custom_call.1} parent=11 // pred_check
          %p228 = pneg %p61
        $region14: #{tpu_custom_call.1} parent=11 // pred_check_branch
          %230 = sbr.rel (%p228) target = $region16
        $region15: #{tpu_custom_call.1} parent=11 // pred_region
          _
        $region16: #{tpu_custom_call.1} parent=11 // pred_fallthru
          _
        // Predicated region
        $region17: #{tpu_custom_call.1} parent=11 // pred_check
          %p231 = pneg %p82
        $region18: #{tpu_custom_call.1} parent=11 // pred_check_branch
          %233 = sbr.rel (%p231) target = $region20
        $region19: #{tpu_custom_call.1} parent=11 // pred_region
          _
        $region20: #{tpu_custom_call.1} parent=11 // pred_fallthru
          _
        // Predicated region
        $region21: #{tpu_custom_call.1} parent=11 // pred_check
          %p234 = pneg %p103
        $region22: #{tpu_custom_call.1} parent=11 // pred_check_branch
          %236 = sbr.rel (%p234) target = $region24
        $region23: #{tpu_custom_call.1} parent=11 // pred_region
          _
        $region24: #{tpu_custom_call.1} parent=11 // pred_fallthru
          _
        // Predicated region
        $region25: #{tpu_custom_call.1} parent=11 // pred_check
          %p237 = pneg %p124
        $region26: #{tpu_custom_call.1} parent=11 // pred_check_branch
          %239 = sbr.rel (%p237) target = $region28
        $region27: #{tpu_custom_call.1} parent=11 // pred_region
          _
        $region28: #{tpu_custom_call.1} parent=11 // pred_fallthru
          _
        // Predicated region
        $region29: #{tpu_custom_call.1} parent=11 // pred_check
          %p240 = pneg %p145
        $region30: #{tpu_custom_call.1} parent=11 // pred_check_branch
          %242 = sbr.rel (%p240) target = $region32
        $region31: #{tpu_custom_call.1} parent=11 // pred_region
          _
        $region32: #{tpu_custom_call.1} parent=11 // pred_fallthru
          _
        // Predicated region
        $region33: #{tpu_custom_call.1} parent=11 // pred_check
          %p243 = pneg %p166
        $region34: #{tpu_custom_call.1} parent=11 // pred_check_branch
          %245 = sbr.rel (%p243) target = $region36
        $region35: #{tpu_custom_call.1} parent=11 // pred_region
          _
        $region36: #{tpu_custom_call.1} parent=11 // pred_fallthru
          _
        // Predicated region
        $region37: #{tpu_custom_call.1} parent=11 // pred_check
          %p246 = pneg %p187
        $region38: #{tpu_custom_call.1} parent=11 // pred_check_branch
          %248 = sbr.rel (%p246) target = $region40
        $region39: #{tpu_custom_call.1} parent=11 // pred_region
          _
        $region40: #{tpu_custom_call.1} parent=11 // pred_fallthru
          _
      $region12: #{tpu_custom_call.1} parent=5 // pred_fallthru
        _
      %p249 = scmp.lt.s32.totalorder %s14, 2
      // Predicated region
      $region41: #{tpu_custom_call.1} parent=5 // pred_check
        %p250 = pneg %p249
      $region42: #{tpu_custom_call.1} parent=5 // pred_check_branch
        %252 = sbr.rel (%p250) target = $region44
      $region43: #{tpu_custom_call.1} parent=5 // pred_region
        // Predicated region
        $region45: #{tpu_custom_call.1} parent=43 // pred_check
          %p253 = pneg %p34
        $region46: #{tpu_custom_call.1} parent=43 // pred_check_branch
          %255 = sbr.rel (%p253) target = $region48
        $region47: #{tpu_custom_call.1} parent=43 // pred_region
          %s256 = sand.u32 %s24, 1
          %s257 = sand.u32 %s24, 1
          %s258 = smul.addr %s257, 64
          %s259 = scalar_lea.vmem [#allocation2], %s258
          %s260 = smul.u32 4, %s14
          %s261 = smul.addr %s260, 8
          %s262 = scalar_lea.vmem %s0, %s261
          // Predicated region
          $region49: #{tpu_custom_call.1} parent=47 // pred_check
            _
          $region50: #{tpu_custom_call.1} parent=47 // pred_check_branch
            %264 = sbr.rel (0) target = $region52
          $region51: #{tpu_custom_call.1} parent=47 // pred_region
            // Predicated region
            $region53: #{tpu_custom_call.1} parent=51 // pred_check
              _
            $region54: #{tpu_custom_call.1} parent=51 // pred_check_branch
              %266 = sbr.rel (0) target = $region56
            $region55: #{tpu_custom_call.1} parent=51 // pred_region
              loop: start=0, step=1, limit=1
              $region57: #{tpu_custom_call.1} parent=55 // loop_pre_header
                _
              $region58: #{tpu_custom_call.1} parent=55 // loop_header
                %s268 = sphi 0, %s272
                %p269 = scmp.ge.s32.totalorder %s268, 1
                %s273 = sphi %s262, %s262
                %s274 = sphi %s259, %s259
              $region59: #{tpu_custom_call.1} parent=55 // loop_header_branch
                %271 = sbr.rel (%p269) target = $region63
              $region60: #{tpu_custom_call.1} parent=55 // loop_body
                %v275 = vld [vmem:[%s273] sm:$0xff]
                %276 = vst [vmem:[%s274] sm:$0xff] %v275
                %v277 = vld [vmem:[%s273 + $0x8] sm:$0xff]
                %278 = vst [vmem:[%s274 + $0x8] sm:$0xff] %v277
                %v279 = vld [vmem:[%s273 + $0x10] sm:$0xff]
                %280 = vst [vmem:[%s274 + $0x10] sm:$0xff] %v279
                %v281 = vld [vmem:[%s273 + $0x18] sm:$0xff]
                %282 = vst [vmem:[%s274 + $0x18] sm:$0xff] %v281
                %v283 = vld [vmem:[%s273 + $0x40] sm:$0xff]
                %284 = vst [vmem:[%s274 + $0x20] sm:$0xff] %v283
                %v285 = vld [vmem:[%s273 + $0x48] sm:$0xff]
                %286 = vst [vmem:[%s274 + $0x28] sm:$0xff] %v285
                %v287 = vld [vmem:[%s273 + $0x50] sm:$0xff]
                %288 = vst [vmem:[%s274 + $0x30] sm:$0xff] %v287
                %v289 = vld [vmem:[%s273 + $0x58] sm:$0xff]
                %290 = vst [vmem:[%s274 + $0x38] sm:$0xff] %v289
              $region61: #{tpu_custom_call.1} parent=55 // loop_footer
                %s272 = sadd.s32 1, %s268
              $region62: #{tpu_custom_call.1} parent=55 // loop_footer_branch
                %267 = sbr.rel target = $region58
              $region63: #{tpu_custom_call.1} parent=55 // loop_exit
                _
            $region56: #{tpu_custom_call.1} parent=51 // pred_fallthru
              _
            // Predicated region
            $region64: #{tpu_custom_call.1} parent=51 // pred_check
              _
            $region65: #{tpu_custom_call.1} parent=51 // pred_check_branch
              %292 = sbr.rel target = $region67
            $region66: #{tpu_custom_call.1} parent=51 // pred_region
              _
            $region67: #{tpu_custom_call.1} parent=51 // pred_fallthru
              _
          $region52: #{tpu_custom_call.1} parent=47 // pred_fallthru
            _
          %293 = vnop
        $region48: #{tpu_custom_call.1} parent=43 // pred_fallthru
          _
      $region44: #{tpu_custom_call.1} parent=5 // pred_fallthru
        _
      %p294 = scmp.le.s32.totalorder 1, %s14
      %p295 = scmp.lt.s32.totalorder %s14, 3
      %p296 = pnand %p294, %p295
      %p297 = pneg %p296
      // Predicated region
      $region68: #{tpu_custom_call.1} parent=5 // pred_check
        _
      $region69: #{tpu_custom_call.1} parent=5 // pred_check_branch
        %299 = sbr.rel (%p296) target = $region71
      $region70: #{tpu_custom_call.1} parent=5 // pred_region
        %s300 = ssub.s32 %s14, 1
        %s301 = sand.u32 %s27, 1
        %s302 = sand.u32 %s27, 1
        %s303 = smul.addr %s302, 64
        %s304 = scalar_lea.vmem [#allocation2], %s303
        // Predicated region
        $region72: #{tpu_custom_call.1} parent=70 // pred_check
          %p305 = pneg %p40
        $region73: #{tpu_custom_call.1} parent=70 // pred_check_branch
          %307 = sbr.rel (%p305) target = $region75
        $region74: #{tpu_custom_call.1} parent=70 // pred_region
          _
        $region75: #{tpu_custom_call.1} parent=70 // pred_fallthru
          _
        %s308 = sand.u32 %s27, 1
        %s309 = sand.u32 %s27, 1
        %s310 = smul.addr %s309, 64
        %s311 = scalar_lea.vmem [#allocation2], %s310
        %p312 = pneg %p40
        %p313 = pneg %p37
        %p314 = pneg %p61
        %p315 = pneg %p58
        %p316 = pneg %p82
        %p317 = pneg %p79
        %p318 = pneg %p103
        %p319 = pneg %p100
        %p320 = pneg %p124
        %p321 = pneg %p121
        %p322 = pneg %p145
        %p323 = pneg %p142
        %p324 = pneg %p166
        %p325 = pneg %p163
        %p326 = pneg %p187
        %p327 = pneg %p184
        %p328 = pneg %p213
        %p329 = pneg %p210
        %p330 = scmp.lt.s32.totalorder %s19, 1
        %s331 = scalar_select %p330, %s19, 1
        %s332 = smul.addr %s331, 8
        %s333 = scalar_lea.vmem %s8, %s332
        %s334 = smul.u32 4, %s19
        %p335 = scmp.lt.s32.totalorder %s19, 1
        %s336 = scalar_select %p335, %s19, 1
        %s337 = smul.addr %s336, 8
        %s338 = scalar_lea.vmem %s8, %s337
        %v339 = vld [vmem:[%s304] sm:$0xff]
        %v340 = vld [vmem:[%s304 + $0x8] sm:$0xff]
        %v341 = vld [vmem:[%s304 + $0x10] sm:$0xff]
        %v342 = vld [vmem:[%s304 + $0x18] sm:$0xff]
        %v343 = vld [vmem:[%s304 + $0x20] sm:$0xff]
        %v344 = vld [vmem:[%s304 + $0x28] sm:$0xff]
        %v345 = vld [vmem:[%s304 + $0x30] sm:$0xff]
        %v346 = vld [vmem:[%s304 + $0x38] sm:$0xff]
        %v347 = vld [vmem:[%s7] sm:$0xff]
        %v348 = vld [vmem:[%s1] sm:$0xf]
        %350 = vset.pattern.permute.xlu0 0
        %351 = vperm.xlu0 %350, %v347
        %v352 = vpop.permute.xlu0 %351
        %vm354 = vcmask 130048
        %v356 = vsel %vm354, %v348, 0
        %358 = vmatprep.subr.mxu0 %v340
        %359 = vmatpush1.msra.mxu0 %v339
        %360 = vmatprep.subr.mxu0 %v344
        %361 = vmatpush1.msra.mxu0 %v343
        %362 = vmatprep.subr.mxu0 0.0
        %363 = vmatpush1.msra.mxu0 0.0
        %364 = vmatprep.subr.mxu0 0.0
        %365 = vmatpush1.msra.mxu0 0.0
        %366 = vmatprep.subr.mxu0 0.0
        %367 = vmatpush1.msra.mxu0 0.0
        %368 = vmatprep.subr.mxu0 0.0
        %369 = vmatpush1.msra.mxu0 0.0
        %370 = vmatprep.subr.mxu0 0.0
        %371 = vmatpush1.msra.mxu0 0.0
        %372 = vmatprep.subr.mxu0 0.0
        %373 = vmatpush1.msra.mxu0 0.0
        %374 = vmatprep.subr.mxu0 0.0
        %375 = vmatpush1.msra.mxu0 0.0
        %376 = vmatprep.subr.mxu0 0.0
        %377 = vmatpush1.msra.mxu0 0.0
        %378 = vmatprep.subr.mxu0 0.0
        %379 = vmatpush1.msra.mxu0 0.0
        %380 = vmatprep.subr.mxu0 0.0
        %381 = vmatpush1.msra.mxu0 0.0
        %382 = vmatprep.subr.mxu0 0.0
        %383 = vmatpush1.msra.mxu0 0.0
        %384 = vmatprep.subr.mxu0 0.0
        %385 = vmatpush1.msra.mxu0 0.0
        %386 = vmatprep.subr.mxu0 0.0
        %387 = vmatpush1.msra.mxu0 0.0
        %388 = vmatprep.subr.mxu0 0.0
        %389 = vmatpush1.msra.mxu0 0.0
        %390 = vmatprep.subr.mxu0 0.0
        %391 = vmatpush1.msra.mxu0 0.0
        %392 = vmatprep.subr.mxu0 0.0
        %393 = vmatpush1.msra.mxu0 0.0
        %394 = vmatprep.subr.mxu0 0.0
        %395 = vmatpush1.msra.mxu0 0.0
        %396 = vmatprep.subr.mxu0 0.0
        %397 = vmatpush1.msra.mxu0 0.0
        %398 = vmatprep.subr.mxu0 0.0
        %399 = vmatpush1.msra.mxu0 0.0
        %400 = vmatprep.subr.mxu0 0.0
        %401 = vmatpush1.msra.mxu0 0.0
        %402 = vmatprep.subr.mxu0 0.0
        %403 = vmatpush1.msra.mxu0 0.0
        %404 = vmatprep.subr.mxu0 0.0
        %405 = vmatpush1.msra.mxu0 0.0
        %406 = vmatprep.subr.mxu0 0.0
        %407 = vmatpush1.msra.mxu0 0.0
        %408 = vmatprep.subr.mxu0 0.0
        %409 = vmatpush1.msra.mxu0 0.0
        %410 = vmatprep.subr.mxu0 0.0
        %411 = vmatpush1.msra.mxu0 0.0
        %412 = vmatprep.subr.mxu0 0.0
        %413 = vmatpush1.msra.mxu0 0.0
        %414 = vmatprep.subr.mxu0 0.0
        %415 = vmatpush1.msra.mxu0 0.0
        %416 = vmatprep.subr.mxu0 0.0
        %417 = vmatpush1.msra.mxu0 0.0
        %418 = vmatprep.subr.mxu0 0.0
        %419 = vmatpush1.msra.mxu0 0.0
        %420 = vmatprep.subr.mxu0 0.0
        %421 = vmatpush1.msra.mxu0 0.0
        %422 = vmatprep.mubr.f32.mxu0 0.0
        %423 = vmatmul.mubr.f32.gmra.mrb[0].mxu0 %v356
        %v424 = vpop.f32.mrb[0].mxu0
        %v425 = vadd.f32 %v352, %v424
        %v426 = vpop.f32.mrb[0].mxu0
        %v427 = vadd.f32 %v352, %v426
        %428 = vdwg.mxu0
        %429 = vmatprep.subr.mxu0 %v342
        %430 = vmatpush1.msra.mxu0 %v341
        %431 = vmatprep.subr.mxu0 %v346
        %432 = vmatpush1.msra.mxu0 %v345
        %433 = vmatprep.subr.mxu0 0.0
        %434 = vmatpush1.msra.mxu0 0.0
        %435 = vmatprep.subr.mxu0 0.0
        %436 = vmatpush1.msra.mxu0 0.0
        %437 = vmatprep.subr.mxu0 0.0
        %438 = vmatpush1.msra.mxu0 0.0
        %439 = vmatprep.subr.mxu0 0.0
        %440 = vmatpush1.msra.mxu0 0.0
        %441 = vmatprep.subr.mxu0 0.0
        %442 = vmatpush1.msra.mxu0 0.0
        %443 = vmatprep.subr.mxu0 0.0
        %444 = vmatpush1.msra.mxu0 0.0
        %445 = vmatprep.subr.mxu0 0.0
        %446 = vmatpush1.msra.mxu0 0.0
        %447 = vmatprep.subr.mxu0 0.0
        %448 = vmatpush1.msra.mxu0 0.0
        %449 = vmatprep.subr.mxu0 0.0
        %450 = vmatpush1.msra.mxu0 0.0
        %451 = vmatprep.subr.mxu0 0.0
        %452 = vmatpush1.msra.mxu0 0.0
        %453 = vmatprep.subr.mxu0 0.0
        %454 = vmatpush1.msra.mxu0 0.0
        %455 = vmatprep.subr.mxu0 0.0
        %456 = vmatpush1.msra.mxu0 0.0
        %457 = vmatprep.subr.mxu0 0.0
        %458 = vmatpush1.msra.mxu0 0.0
        %459 = vmatprep.subr.mxu0 0.0
        %460 = vmatpush1.msra.mxu0 0.0
        %461 = vmatprep.subr.mxu0 0.0
        %462 = vmatpush1.msra.mxu0 0.0
        %463 = vmatprep.subr.mxu0 0.0
        %464 = vmatpush1.msra.mxu0 0.0
        %465 = vmatprep.subr.mxu0 0.0
        %466 = vmatpush1.msra.mxu0 0.0
        %467 = vmatprep.subr.mxu0 0.0
        %468 = vmatpush1.msra.mxu0 0.0
        %469 = vmatprep.subr.mxu0 0.0
        %470 = vmatpush1.msra.mxu0 0.0
        %471 = vmatprep.subr.mxu0 0.0
        %472 = vmatpush1.msra.mxu0 0.0
        %473 = vmatprep.subr.mxu0 0.0
        %474 = vmatpush1.msra.mxu0 0.0
        %475 = vmatprep.subr.mxu0 0.0
        %476 = vmatpush1.msra.mxu0 0.0
        %477 = vmatprep.subr.mxu0 0.0
        %478 = vmatpush1.msra.mxu0 0.0
        %479 = vmatprep.subr.mxu0 0.0
        %480 = vmatpush1.msra.mxu0 0.0
        %481 = vmatprep.subr.mxu0 0.0
        %482 = vmatpush1.msra.mxu0 0.0
        %483 = vmatprep.subr.mxu0 0.0
        %484 = vmatpush1.msra.mxu0 0.0
        %485 = vmatprep.subr.mxu0 0.0
        %486 = vmatpush1.msra.mxu0 0.0
        %487 = vmatprep.subr.mxu0 0.0
        %488 = vmatpush1.msra.mxu0 0.0
        %489 = vmatprep.subr.mxu0 0.0
        %490 = vmatpush1.msra.mxu0 0.0
        %491 = vmatprep.subr.mxu0 0.0
        %492 = vmatpush1.msra.mxu0 0.0
        %493 = vmatprep.mubr.f32.mxu0 0.0
        %494 = vmatmul.mubr.f32.gmra.mrb[0].mxu0 %v356
        %v495 = vpop.f32.mrb[0].mxu0
        %v496 = vadd.f32 %v352, %v495
        %v497 = vpop.f32.mrb[0].mxu0
        %v498 = vadd.f32 %v352, %v497
        %499 = vdwg.mxu0
        %v500 = vxor.u32 %v425, 2147483648
        %v501 = vxor.u32 %v427, 2147483648
        %v502 = vxor.u32 %v496, 2147483648
        %v503 = vxor.u32 %v498, 2147483648
        %v504 = vmul.f32 %v500, 1.442695
        %v505 = vpow.pop %v504
        %v506 = vmul.f32 %v501, 1.442695
        %v507 = vpow.pop %v506
        %v508 = vmul.f32 %v502, 1.442695
        %v509 = vpow.pop %v508
        %v510 = vmul.f32 %v503, 1.442695
        %v511 = vpow.pop %v510
        %v512 = vadd.f32 %v505, 1.0
        %v513 = vadd.f32 %v507, 1.0
        %v514 = vadd.f32 %v509, 1.0
        %v515 = vadd.f32 %v511, 1.0
        %v516 = vrcp.pop %v512
        %v517 = vmul.f32 1.0, %v516
        %v518 = vrcp.pop %v513
        %v519 = vmul.f32 1.0, %v518
        %v520 = vrcp.pop %v514
        %v521 = vmul.f32 1.0, %v520
        %v522 = vrcp.pop %v515
        %v523 = vmul.f32 1.0, %v522
        %v524 = vmul.f32 %v425, %v517
        %v525 = vmul.f32 %v427, %v519
        %v526 = vmul.f32 %v496, %v521
        %v527 = vmul.f32 %v498, %v523
        %v528 = vld [vmem:[%s2] sm:$0x1]
        %529 = vset.pattern.permute.xlu0 1
        %530 = vperm.xlu0 %529, %v347
        %v531 = vpop.permute.xlu0 %530
        %vm533 = vcmask 31744
        %v535 = vsel %vm533, %v528, 0
        %vm537 = vcmask 1043456
        %v539 = vsel %vm537, %v524, 0
        %v542 = vsel %vm537, %v525, 0
        %v545 = vsel %vm537, %v526, 0
        %v548 = vsel %vm537, %v527, 0
        %550 = vmatprep.subr.mxu0 %v542
        %551 = vmatpush1.msra.mxu0 %v539
        %552 = vmatprep.subr.mxu0 0.0
        %553 = vmatpush1.msra.mxu0 0.0
        %554 = vmatprep.subr.mxu0 0.0
        %555 = vmatpush1.msra.mxu0 0.0
        %556 = vmatprep.subr.mxu0 0.0
        %557 = vmatpush1.msra.mxu0 0.0
        %558 = vmatprep.subr.mxu0 0.0
        %559 = vmatpush1.msra.mxu0 0.0
        %560 = vmatprep.subr.mxu0 0.0
        %561 = vmatpush1.msra.mxu0 0.0
        %562 = vmatprep.subr.mxu0 0.0
        %563 = vmatpush1.msra.mxu0 0.0
        %564 = vmatprep.subr.mxu0 0.0
        %565 = vmatpush1.msra.mxu0 0.0
        %566 = vmatprep.subr.mxu0 0.0
        %567 = vmatpush1.msra.mxu0 0.0
        %568 = vmatprep.subr.mxu0 0.0
        %569 = vmatpush1.msra.mxu0 0.0
        %570 = vmatprep.subr.mxu0 0.0
        %571 = vmatpush1.msra.mxu0 0.0
        %572 = vmatprep.subr.mxu0 0.0
        %573 = vmatpush1.msra.mxu0 0.0
        %574 = vmatprep.subr.mxu0 0.0
        %575 = vmatpush1.msra.mxu0 0.0
        %576 = vmatprep.subr.mxu0 0.0
        %577 = vmatpush1.msra.mxu0 0.0
        %578 = vmatprep.subr.mxu0 0.0
        %579 = vmatpush1.msra.mxu0 0.0
        %580 = vmatprep.subr.mxu0 0.0
        %581 = vmatpush1.msra.mxu0 0.0
        %582 = vmatprep.subr.mxu0 0.0
        %583 = vmatpush1.msra.mxu0 0.0
        %584 = vmatprep.subr.mxu0 0.0
        %585 = vmatpush1.msra.mxu0 0.0
        %586 = vmatprep.subr.mxu0 0.0
        %587 = vmatpush1.msra.mxu0 0.0
        %588 = vmatprep.subr.mxu0 0.0
        %589 = vmatpush1.msra.mxu0 0.0
        %590 = vmatprep.subr.mxu0 0.0
        %591 = vmatpush1.msra.mxu0 0.0
        %592 = vmatprep.subr.mxu0 0.0
        %593 = vmatpush1.msra.mxu0 0.0
        %594 = vmatprep.subr.mxu0 0.0
        %595 = vmatpush1.msra.mxu0 0.0
        %596 = vmatprep.subr.mxu0 0.0
        %597 = vmatpush1.msra.mxu0 0.0
        %598 = vmatprep.subr.mxu0 0.0
        %599 = vmatpush1.msra.mxu0 0.0
        %600 = vmatprep.subr.mxu0 0.0
        %601 = vmatpush1.msra.mxu0 0.0
        %602 = vmatprep.subr.mxu0 0.0
        %603 = vmatpush1.msra.mxu0 0.0
        %604 = vmatprep.subr.mxu0 0.0
        %605 = vmatpush1.msra.mxu0 0.0
        %606 = vmatprep.subr.mxu0 0.0
        %607 = vmatpush1.msra.mxu0 0.0
        %608 = vmatprep.subr.mxu0 0.0
        %609 = vmatpush1.msra.mxu0 0.0
        %610 = vmatprep.subr.mxu0 0.0
        %611 = vmatpush1.msra.mxu0 0.0
        %612 = vmatprep.subr.mxu0 0.0
        %613 = vmatpush1.msra.mxu0 0.0
        %614 = vmatprep.mubr.f32.mxu0 0.0
        %615 = vmatmul.mubr.f32.gmra.mrb[0].mxu0 %v535
        %v616 = vpop.f32.mrb[0].mxu0
        %v617 = vadd.f32 %v531, %v616
        %v618 = vpop.f32.mrb[0].mxu0
        %v619 = vadd.f32 %v531, %v618
        %620 = vdwg.mxu0
        %621 = vmatprep.subr.mxu0 %v548
        %622 = vmatpush1.msra.mxu0 %v545
        %623 = vmatprep.subr.mxu0 0.0
        %624 = vmatpush1.msra.mxu0 0.0
        %625 = vmatprep.subr.mxu0 0.0
        %626 = vmatpush1.msra.mxu0 0.0
        %627 = vmatprep.subr.mxu0 0.0
        %628 = vmatpush1.msra.mxu0 0.0
        %629 = vmatprep.subr.mxu0 0.0
        %630 = vmatpush1.msra.mxu0 0.0
        %631 = vmatprep.subr.mxu0 0.0
        %632 = vmatpush1.msra.mxu0 0.0
        %633 = vmatprep.subr.mxu0 0.0
        %634 = vmatpush1.msra.mxu0 0.0
        %635 = vmatprep.subr.mxu0 0.0
        %636 = vmatpush1.msra.mxu0 0.0
        %637 = vmatprep.subr.mxu0 0.0
        %638 = vmatpush1.msra.mxu0 0.0
        %639 = vmatprep.subr.mxu0 0.0
        %640 = vmatpush1.msra.mxu0 0.0
        %641 = vmatprep.subr.mxu0 0.0
        %642 = vmatpush1.msra.mxu0 0.0
        %643 = vmatprep.subr.mxu0 0.0
        %644 = vmatpush1.msra.mxu0 0.0
        %645 = vmatprep.subr.mxu0 0.0
        %646 = vmatpush1.msra.mxu0 0.0
        %647 = vmatprep.subr.mxu0 0.0
        %648 = vmatpush1.msra.mxu0 0.0
        %649 = vmatprep.subr.mxu0 0.0
        %650 = vmatpush1.msra.mxu0 0.0
        %651 = vmatprep.subr.mxu0 0.0
        %652 = vmatpush1.msra.mxu0 0.0
        %653 = vmatprep.subr.mxu0 0.0
        %654 = vmatpush1.msra.mxu0 0.0
        %655 = vmatprep.subr.mxu0 0.0
        %656 = vmatpush1.msra.mxu0 0.0
        %657 = vmatprep.subr.mxu0 0.0
        %658 = vmatpush1.msra.mxu0 0.0
        %659 = vmatprep.subr.mxu0 0.0
        %660 = vmatpush1.msra.mxu0 0.0
        %661 = vmatprep.subr.mxu0 0.0
        %662 = vmatpush1.msra.mxu0 0.0
        %663 = vmatprep.subr.mxu0 0.0
        %664 = vmatpush1.msra.mxu0 0.0
        %665 = vmatprep.subr.mxu0 0.0
        %666 = vmatpush1.msra.mxu0 0.0
        %667 = vmatprep.subr.mxu0 0.0
        %668 = vmatpush1.msra.mxu0 0.0
        %669 = vmatprep.subr.mxu0 0.0
        %670 = vmatpush1.msra.mxu0 0.0
        %671 = vmatprep.subr.mxu0 0.0
        %672 = vmatpush1.msra.mxu0 0.0
        %673 = vmatprep.subr.mxu0 0.0
        %674 = vmatpush1.msra.mxu0 0.0
        %675 = vmatprep.subr.mxu0 0.0
        %676 = vmatpush1.msra.mxu0 0.0
        %677 = vmatprep.subr.mxu0 0.0
        %678 = vmatpush1.msra.mxu0 0.0
        %679 = vmatprep.subr.mxu0 0.0
        %680 = vmatpush1.msra.mxu0 0.0
        %681 = vmatprep.subr.mxu0 0.0
        %682 = vmatpush1.msra.mxu0 0.0
        %683 = vmatprep.subr.mxu0 0.0
        %684 = vmatpush1.msra.mxu0 0.0
        %685 = vmatprep.mubr.f32.mxu0 0.0
        %686 = vmatmul.mubr.f32.gmra.mrb[0].mxu0 %v535
        %v687 = vpop.f32.mrb[0].mxu0
        %v688 = vadd.f32 %v531, %v687
        %v689 = vpop.f32.mrb[0].mxu0
        %v690 = vadd.f32 %v531, %v689
        %691 = vdwg.mxu0
        %v692 = vxor.u32 %v617, 2147483648
        %v693 = vxor.u32 %v619, 2147483648
        %v694 = vxor.u32 %v688, 2147483648
        %v695 = vxor.u32 %v690, 2147483648
        %v696 = vmul.f32 %v692, 1.442695
        %v697 = vpow.pop %v696
        %v698 = vmul.f32 %v693, 1.442695
        %v699 = vpow.pop %v698
        %v700 = vmul.f32 %v694, 1.442695
        %v701 = vpow.pop %v700
        %v702 = vmul.f32 %v695, 1.442695
        %v703 = vpow.pop %v702
        %v704 = vadd.f32 %v697, 1.0
        %v705 = vadd.f32 %v699, 1.0
        %v706 = vadd.f32 %v701, 1.0
        %v707 = vadd.f32 %v703, 1.0
        %v708 = vrcp.pop %v704
        %v709 = vmul.f32 1.0, %v708
        %v710 = vrcp.pop %v705
        %v711 = vmul.f32 1.0, %v710
        %v712 = vrcp.pop %v706
        %v713 = vmul.f32 1.0, %v712
        %v714 = vrcp.pop %v707
        %v715 = vmul.f32 1.0, %v714
        %v716 = vlaneseq
        %v717 = vshrl.u32 %v716, 7
        %v718 = vsub.s32 0, %v717
        %v719 = vrot.slane %v709, %v718
        %v720 = vlaneseq
        %v721 = vshrl.u32 %v720, 7
        %v722 = vsub.s32 0, %v721
        %v723 = vrot.slane %v711, %v722
        %v724 = vlaneseq
        %v725 = vshrl.u32 %v724, 7
        %v726 = vsub.s32 0, %v725
        %v727 = vrot.slane %v713, %v726
        %v728 = vlaneseq
        %v729 = vshrl.u32 %v728, 7
        %v730 = vsub.s32 0, %v729
        %v731 = vrot.slane %v715, %v730
        %v732 = vmul.f32 %v339, %v719
        %v733 = vmul.f32 %v340, %v723
        %v734 = vmul.f32 %v341, %v727
        %v735 = vmul.f32 %v342, %v731
        %v736 = vmul.f32 %v343, %v719
        %v737 = vmul.f32 %v344, %v723
        %v738 = vmul.f32 %v345, %v727
        %v739 = vmul.f32 %v346, %v731
        %v740 = vld [vmem:[%s6] sm:$0xff]
        %v741 = vld [vmem:[%s6 + $0x8] sm:$0xff]
        %v742 = vld [vmem:[%s6 + $0x10] sm:$0xff]
        %v743 = vld [vmem:[%s6 + $0x18] sm:$0xff]
        %v744 = vld [vmem:[%s6 + $0x20] sm:$0xff]
        %v745 = vld [vmem:[%s6 + $0x28] sm:$0xff]
        %v746 = vld [vmem:[%s6 + $0x30] sm:$0xff]
        %v747 = vld [vmem:[%s6 + $0x38] sm:$0xff]
        %v748 = vld [vmem:[%s6 + $0x40] sm:$0xff]
        %v749 = vld [vmem:[%s6 + $0x48] sm:$0xff]
        %v750 = vld [vmem:[%s6 + $0x50] sm:$0xff]
        %v751 = vld [vmem:[%s6 + $0x58] sm:$0xff]
        %v752 = vld [vmem:[%s6 + $0x60] sm:$0xff]
        %v753 = vld [vmem:[%s6 + $0x68] sm:$0xff]
        %v754 = vld [vmem:[%s6 + $0x70] sm:$0xff]
        %v755 = vld [vmem:[%s6 + $0x78] sm:$0xff]
        %v756 = vld [vmem:[%s6 + $0x80] sm:$0xff]
        %v757 = vld [vmem:[%s6 + $0x88] sm:$0xff]
        %v758 = vld [vmem:[%s6 + $0x90] sm:$0xff]
        %v759 = vld [vmem:[%s6 + $0x98] sm:$0xff]
        %v760 = vld [vmem:[%s6 + $0xa0] sm:$0xff]
        %v761 = vld [vmem:[%s6 + $0xa8] sm:$0xff]
        %v762 = vld [vmem:[%s6 + $0xb0] sm:$0xff]
        %v763 = vld [vmem:[%s6 + $0xb8] sm:$0xff]
        %v764 = vld [vmem:[%s6 + $0xc0] sm:$0xff]
        %v765 = vld [vmem:[%s6 + $0xc8] sm:$0xff]
        %v766 = vld [vmem:[%s6 + $0xd0] sm:$0xff]
        %v767 = vld [vmem:[%s6 + $0xd8] sm:$0xff]
        %v768 = vld [vmem:[%s6 + $0xe0] sm:$0xff]
        %v769 = vld [vmem:[%s6 + $0xe8] sm:$0xff]
        %v770 = vld [vmem:[%s6 + $0xf0] sm:$0xff]
        %v771 = vld [vmem:[%s6 + $0xf8] sm:$0xff]
        %v772 = vld [vmem:[%s6 + $0x100] sm:$0xff]
        %v773 = vld [vmem:[%s6 + $0x108] sm:$0xff]
        %v774 = vld [vmem:[%s6 + $0x110] sm:$0xff]
        %v775 = vld [vmem:[%s6 + $0x118] sm:$0xff]
        %v776 = vld [vmem:[%s6 + $0x120] sm:$0xff]
        %v777 = vld [vmem:[%s6 + $0x128] sm:$0xff]
        %v778 = vld [vmem:[%s6 + $0x130] sm:$0xff]
        %v779 = vld [vmem:[%s6 + $0x138] sm:$0xff]
        %v780 = vld [vmem:[%s6 + $0x140] sm:$0xff]
        %v781 = vld [vmem:[%s6 + $0x148] sm:$0xff]
        %v782 = vld [vmem:[%s6 + $0x150] sm:$0xff]
        %v783 = vld [vmem:[%s6 + $0x158] sm:$0xff]
        %v784 = vld [vmem:[%s6 + $0x160] sm:$0xff]
        %v785 = vld [vmem:[%s6 + $0x168] sm:$0xff]
        %v786 = vld [vmem:[%s6 + $0x170] sm:$0xff]
        %v787 = vld [vmem:[%s6 + $0x178] sm:$0xff]
        %v788 = vld [vmem:[%s6 + $0x180] sm:$0xff]
        %v789 = vld [vmem:[%s6 + $0x188] sm:$0xff]
        %v790 = vld [vmem:[%s6 + $0x190] sm:$0xff]
        %v791 = vld [vmem:[%s6 + $0x198] sm:$0xff]
        %v792 = vld [vmem:[%s6 + $0x1a0] sm:$0xff]
        %v793 = vld [vmem:[%s6 + $0x1a8] sm:$0xff]
        %v794 = vld [vmem:[%s6 + $0x1b0] sm:$0xff]
        %v795 = vld [vmem:[%s6 + $0x1b8] sm:$0xff]
        %v796 = vld [vmem:[%s6 + $0x1c0] sm:$0xff]
        %v797 = vld [vmem:[%s6 + $0x1c8] sm:$0xff]
        %v798 = vld [vmem:[%s6 + $0x1d0] sm:$0xff]
        %v799 = vld [vmem:[%s6 + $0x1d8] sm:$0xff]
        %v800 = vld [vmem:[%s6 + $0x1e0] sm:$0xff]
        %v801 = vld [vmem:[%s6 + $0x1e8] sm:$0xff]
        %v802 = vld [vmem:[%s6 + $0x1f0] sm:$0xff]
        %v803 = vld [vmem:[%s6 + $0x1f8] sm:$0xff]
        %804 = vmatprep.subr.mxu0 0.0
        %805 = vmatpush1.msra.mxu0 %v740
        %806 = vmatprep.subr.mxu0 0.0
        %807 = vmatpush1.msra.mxu0 %v741
        %808 = vmatprep.subr.mxu0 0.0
        %809 = vmatpush1.msra.mxu0 %v742
        %810 = vmatprep.subr.mxu0 0.0
        %811 = vmatpush1.msra.mxu0 %v743
        %812 = vmatprep.subr.mxu0 0.0
        %813 = vmatpush1.msra.mxu0 %v744
        %814 = vmatprep.subr.mxu0 0.0
        %815 = vmatpush1.msra.mxu0 %v745
        %816 = vmatprep.subr.mxu0 0.0
        %817 = vmatpush1.msra.mxu0 %v746
        %818 = vmatprep.subr.mxu0 0.0
        %819 = vmatpush1.msra.mxu0 %v747
        %820 = vmatprep.subr.mxu0 0.0
        %821 = vmatpush1.msra.mxu0 %v748
        %822 = vmatprep.subr.mxu0 0.0
        %823 = vmatpush1.msra.mxu0 %v749
        %824 = vmatprep.subr.mxu0 0.0
        %825 = vmatpush1.msra.mxu0 %v750
        %826 = vmatprep.subr.mxu0 0.0
        %827 = vmatpush1.msra.mxu0 %v751
        %828 = vmatprep.subr.mxu0 0.0
        %829 = vmatpush1.msra.mxu0 %v752
        %830 = vmatprep.subr.mxu0 0.0
        %831 = vmatpush1.msra.mxu0 %v753
        %832 = vmatprep.subr.mxu0 0.0
        %833 = vmatpush1.msra.mxu0 %v754
        %834 = vmatprep.subr.mxu0 0.0
        %835 = vmatpush1.msra.mxu0 %v755
        %836 = vmatprep.subr.mxu0 0.0
        %837 = vmatpush1.msra.mxu0 %v756
        %838 = vmatprep.subr.mxu0 0.0
        %839 = vmatpush1.msra.mxu0 %v757
        %840 = vmatprep.subr.mxu0 0.0
        %841 = vmatpush1.msra.mxu0 %v758
        %842 = vmatprep.subr.mxu0 0.0
        %843 = vmatpush1.msra.mxu0 %v759
        %844 = vmatprep.subr.mxu0 0.0
        %845 = vmatpush1.msra.mxu0 %v760
        %846 = vmatprep.subr.mxu0 0.0
        %847 = vmatpush1.msra.mxu0 %v761
        %848 = vmatprep.subr.mxu0 0.0
        %849 = vmatpush1.msra.mxu0 %v762
        %850 = vmatprep.subr.mxu0 0.0
        %851 = vmatpush1.msra.mxu0 %v763
        %852 = vmatprep.subr.mxu0 0.0
        %853 = vmatpush1.msra.mxu0 %v764
        %854 = vmatprep.subr.mxu0 0.0
        %855 = vmatpush1.msra.mxu0 %v765
        %856 = vmatprep.subr.mxu0 0.0
        %857 = vmatpush1.msra.mxu0 %v766
        %858 = vmatprep.subr.mxu0 0.0
        %859 = vmatpush1.msra.mxu0 %v767
        %860 = vmatprep.subr.mxu0 0.0
        %861 = vmatpush1.msra.mxu0 %v768
        %862 = vmatprep.subr.mxu0 0.0
        %863 = vmatpush1.msra.mxu0 %v769
        %864 = vmatprep.subr.mxu0 0.0
        %865 = vmatpush1.msra.mxu0 %v770
        %866 = vmatprep.subr.mxu0 0.0
        %867 = vmatpush1.msra.mxu0 %v771
        %868 = vmatprep.mubr.f32.mxu0 %v733
        %869 = vmatmul.mubr.f32.gmra.mrb[0].mxu0 %v732
        %v870 = vpop.f32.mrb[0].mxu0
        %v871 = vadd.f32 0.0, %v870
        %v872 = vpop.f32.mrb[0].mxu0
        %873 = vmatprep.mubr.f32.mxu0 %v737
        %874 = vmatmul.mubr.f32.gmra.mrb[0].mxu0 %v736
        %v875 = vpop.f32.mrb[0].mxu0
        %v876 = vadd.f32 0.0, %v875
        %v877 = vpop.f32.mrb[0].mxu0
        %878 = vdwg.mxu0
        %879 = vmatprep.subr.mxu0 0.0
        %880 = vmatpush1.msra.mxu0 %v772
        %881 = vmatprep.subr.mxu0 0.0
        %882 = vmatpush1.msra.mxu0 %v773
        %883 = vmatprep.subr.mxu0 0.0
        %884 = vmatpush1.msra.mxu0 %v774
        %885 = vmatprep.subr.mxu0 0.0
        %886 = vmatpush1.msra.mxu0 %v775
        %887 = vmatprep.subr.mxu0 0.0
        %888 = vmatpush1.msra.mxu0 %v776
        %889 = vmatprep.subr.mxu0 0.0
        %890 = vmatpush1.msra.mxu0 %v777
        %891 = vmatprep.subr.mxu0 0.0
        %892 = vmatpush1.msra.mxu0 %v778
        %893 = vmatprep.subr.mxu0 0.0
        %894 = vmatpush1.msra.mxu0 %v779
        %895 = vmatprep.subr.mxu0 0.0
        %896 = vmatpush1.msra.mxu0 %v780
        %897 = vmatprep.subr.mxu0 0.0
        %898 = vmatpush1.msra.mxu0 %v781
        %899 = vmatprep.subr.mxu0 0.0
        %900 = vmatpush1.msra.mxu0 %v782
        %901 = vmatprep.subr.mxu0 0.0
        %902 = vmatpush1.msra.mxu0 %v783
        %903 = vmatprep.subr.mxu0 0.0
        %904 = vmatpush1.msra.mxu0 %v784
        %905 = vmatprep.subr.mxu0 0.0
        %906 = vmatpush1.msra.mxu0 %v785
        %907 = vmatprep.subr.mxu0 0.0
        %908 = vmatpush1.msra.mxu0 %v786
        %909 = vmatprep.subr.mxu0 0.0
        %910 = vmatpush1.msra.mxu0 %v787
        %911 = vmatprep.subr.mxu0 0.0
        %912 = vmatpush1.msra.mxu0 %v788
        %913 = vmatprep.subr.mxu0 0.0
        %914 = vmatpush1.msra.mxu0 %v789
        %915 = vmatprep.subr.mxu0 0.0
        %916 = vmatpush1.msra.mxu0 %v790
        %917 = vmatprep.subr.mxu0 0.0
        %918 = vmatpush1.msra.mxu0 %v791
        %919 = vmatprep.subr.mxu0 0.0
        %920 = vmatpush1.msra.mxu0 %v792
        %921 = vmatprep.subr.mxu0 0.0
        %922 = vmatpush1.msra.mxu0 %v793
        %923 = vmatprep.subr.mxu0 0.0
        %924 = vmatpush1.msra.mxu0 %v794
        %925 = vmatprep.subr.mxu0 0.0
        %926 = vmatpush1.msra.mxu0 %v795
        %927 = vmatprep.subr.mxu0 0.0
        %928 = vmatpush1.msra.mxu0 %v796
        %929 = vmatprep.subr.mxu0 0.0
        %930 = vmatpush1.msra.mxu0 %v797
        %931 = vmatprep.subr.mxu0 0.0
        %932 = vmatpush1.msra.mxu0 %v798
        %933 = vmatprep.subr.mxu0 0.0
        %934 = vmatpush1.msra.mxu0 %v799
        %935 = vmatprep.subr.mxu0 0.0
        %936 = vmatpush1.msra.mxu0 %v800
        %937 = vmatprep.subr.mxu0 0.0
        %938 = vmatpush1.msra.mxu0 %v801
        %939 = vmatprep.subr.mxu0 0.0
        %940 = vmatpush1.msra.mxu0 %v802
        %941 = vmatprep.subr.mxu0 0.0
        %942 = vmatpush1.msra.mxu0 %v803
        %943 = vmatprep.mubr.f32.mxu0 %v735
        %944 = vmatmul.mubr.f32.gmra.mrb[0].mxu0 %v734
        %v945 = vpop.f32.mrb[0].mxu0
        %v946 = vadd.f32 %v871, %v945
        %v947 = vpop.f32.mrb[0].mxu0
        %948 = vmatprep.mubr.f32.mxu0 %v739
        %949 = vmatmul.mubr.f32.gmra.mrb[0].mxu0 %v738
        %v950 = vpop.f32.mrb[0].mxu0
        %v951 = vadd.f32 %v876, %v950
        %v952 = vpop.f32.mrb[0].mxu0
        %953 = vdwg.mxu0
        %956 = vrot.lane.b32.xlu0 %v732, 64
        %v957 = vpop.permute.xlu0 %956
        %958 = vrot.lane.b32.xlu0 %v736, 64
        %v959 = vpop.permute.xlu0 %958
        %964 = vrot.lane.b32.xlu0 %v733, 64
        %v965 = vpop.permute.xlu0 %964
        %966 = vrot.lane.b32.xlu0 %v737, 64
        %v967 = vpop.permute.xlu0 %966
        %972 = vrot.lane.b32.xlu0 %v734, 64
        %v973 = vpop.permute.xlu0 %972
        %974 = vrot.lane.b32.xlu0 %v738, 64
        %v975 = vpop.permute.xlu0 %974
        %980 = vrot.lane.b32.xlu0 %v735, 64
        %v981 = vpop.permute.xlu0 %980
        %982 = vrot.lane.b32.xlu0 %v739, 64
        %v983 = vpop.permute.xlu0 %982
        %v986 = vcombine.low %v732, %v733
        %v987 = vcombine.high %v732, %v733
        %v989 = vunpack.c.l.s4 1983009808
        %v990 = vunpack.c.0.s8 %v989
        %v991 = vlaneseq
        %v992 = vshrl.u32 %v991, 7
        %v993 = vsub.s32 %v990, %v992
        %v994 = vrot.slane %v986, %v993
        %v996 = vunpack.c.l.s4 1983009808
        %v997 = vunpack.c.0.s8 %v996
        %v998 = vlaneseq
        %v999 = vshrl.u32 %v998, 7
        %v1000 = vsub.s32 %v997, %v999
        %v1001 = vrot.slane %v987, %v1000
        %v1002 = vcombine.low %v957, %v965
        %v1003 = vcombine.high %v957, %v965
        %v1005 = vunpack.c.l.s4 1983009808
        %v1006 = vunpack.c.0.s8 %v1005
        %v1007 = vlaneseq
        %v1008 = vshrl.u32 %v1007, 7
        %v1009 = vsub.s32 %v1006, %v1008
        %v1010 = vrot.slane %v1002, %v1009
        %v1012 = vunpack.c.l.s4 1983009808
        %v1013 = vunpack.c.0.s8 %v1012
        %v1014 = vlaneseq
        %v1015 = vshrl.u32 %v1014, 7
        %v1016 = vsub.s32 %v1013, %v1015
        %v1017 = vrot.slane %v1003, %v1016
        %v1018 = vcombine.low %v734, %v735
        %v1019 = vcombine.high %v734, %v735
        %v1021 = vunpack.c.l.s4 1983009808
        %v1022 = vunpack.c.0.s8 %v1021
        %v1023 = vlaneseq
        %v1024 = vshrl.u32 %v1023, 7
        %v1025 = vsub.s32 %v1022, %v1024
        %v1026 = vrot.slane %v1018, %v1025
        %v1028 = vunpack.c.l.s4 1983009808
        %v1029 = vunpack.c.0.s8 %v1028
        %v1030 = vlaneseq
        %v1031 = vshrl.u32 %v1030, 7
        %v1032 = vsub.s32 %v1029, %v1031
        %v1033 = vrot.slane %v1019, %v1032
        %v1034 = vcombine.low %v973, %v981
        %v1035 = vcombine.high %v973, %v981
        %v1037 = vunpack.c.l.s4 1983009808
        %v1038 = vunpack.c.0.s8 %v1037
        %v1039 = vlaneseq
        %v1040 = vshrl.u32 %v1039, 7
        %v1041 = vsub.s32 %v1038, %v1040
        %v1042 = vrot.slane %v1034, %v1041
        %v1044 = vunpack.c.l.s4 1983009808
        %v1045 = vunpack.c.0.s8 %v1044
        %v1046 = vlaneseq
        %v1047 = vshrl.u32 %v1046, 7
        %v1048 = vsub.s32 %v1045, %v1047
        %v1049 = vrot.slane %v1035, %v1048
        %v1050 = vcombine.low %v994, %v1010
        %v1051 = vcombine.high %v994, %v1010
        %v1053 = vunpack.c.l.s4 1934713408
        %v1054 = vunpack.c.0.s8 %v1053
        %v1055 = vlaneseq
        %v1056 = vshrl.u32 %v1055, 7
        %v1057 = vsub.s32 %v1054, %v1056
        %v1058 = vrot.slane %v1050, %v1057
        %v1060 = vunpack.c.l.s4 1934713408
        %v1061 = vunpack.c.0.s8 %v1060
        %v1062 = vlaneseq
        %v1063 = vshrl.u32 %v1062, 7
        %v1064 = vsub.s32 %v1061, %v1063
        %v1065 = vrot.slane %v1051, %v1064
        %v1066 = vcombine.low %v1001, %v1017
        %v1067 = vcombine.high %v1001, %v1017
        %v1069 = vunpack.c.l.s4 1934713408
        %v1070 = vunpack.c.0.s8 %v1069
        %v1071 = vlaneseq
        %v1072 = vshrl.u32 %v1071, 7
        %v1073 = vsub.s32 %v1070, %v1072
        %v1074 = vrot.slane %v1066, %v1073
        %v1076 = vunpack.c.l.s4 1934713408
        %v1077 = vunpack.c.0.s8 %v1076
        %v1078 = vlaneseq
        %v1079 = vshrl.u32 %v1078, 7
        %v1080 = vsub.s32 %v1077, %v1079
        %v1081 = vrot.slane %v1067, %v1080
        %v1082 = vcombine.low %v1026, %v1042
        %v1083 = vcombine.high %v1026, %v1042
        %v1085 = vunpack.c.l.s4 1934713408
        %v1086 = vunpack.c.0.s8 %v1085
        %v1087 = vlaneseq
        %v1088 = vshrl.u32 %v1087, 7
        %v1089 = vsub.s32 %v1086, %v1088
        %v1090 = vrot.slane %v1082, %v1089
        %v1092 = vunpack.c.l.s4 1934713408
        %v1093 = vunpack.c.0.s8 %v1092
        %v1094 = vlaneseq
        %v1095 = vshrl.u32 %v1094, 7
        %v1096 = vsub.s32 %v1093, %v1095
        %v1097 = vrot.slane %v1083, %v1096
        %v1098 = vcombine.low %v1033, %v1049
        %v1099 = vcombine.high %v1033, %v1049
        %v1101 = vunpack.c.l.s4 1934713408
        %v1102 = vunpack.c.0.s8 %v1101
        %v1103 = vlaneseq
        %v1104 = vshrl.u32 %v1103, 7
        %v1105 = vsub.s32 %v1102, %v1104
        %v1106 = vrot.slane %v1098, %v1105
        %v1108 = vunpack.c.l.s4 1934713408
        %v1109 = vunpack.c.0.s8 %v1108
        %v1110 = vlaneseq
        %v1111 = vshrl.u32 %v1110, 7
        %v1112 = vsub.s32 %v1109, %v1111
        %v1113 = vrot.slane %v1099, %v1112
        %v1114 = vcombine.low %v1058, %v1090
        %v1115 = vcombine.high %v1058, %v1090
        %v1116 = vcombine.low %v1065, %v1097
        %v1117 = vcombine.high %v1065, %v1097
        %v1118 = vcombine.low %v1074, %v1106
        %v1119 = vcombine.high %v1074, %v1106
        %v1120 = vcombine.low %v1081, %v1113
        %v1121 = vcombine.high %v1081, %v1113
        %v1122 = vcombine.low %v736, %v737
        %v1123 = vcombine.high %v736, %v737
        %v1125 = vunpack.c.l.s4 1983009808
        %v1126 = vunpack.c.0.s8 %v1125
        %v1127 = vlaneseq
        %v1128 = vshrl.u32 %v1127, 7
        %v1129 = vsub.s32 %v1126, %v1128
        %v1130 = vrot.slane %v1122, %v1129
        %v1132 = vunpack.c.l.s4 1983009808
        %v1133 = vunpack.c.0.s8 %v1132
        %v1134 = vlaneseq
        %v1135 = vshrl.u32 %v1134, 7
        %v1136 = vsub.s32 %v1133, %v1135
        %v1137 = vrot.slane %v1123, %v1136
        %v1138 = vcombine.low %v959, %v967
        %v1139 = vcombine.high %v959, %v967
        %v1141 = vunpack.c.l.s4 1983009808
        %v1142 = vunpack.c.0.s8 %v1141
        %v1143 = vlaneseq
        %v1144 = vshrl.u32 %v1143, 7
        %v1145 = vsub.s32 %v1142, %v1144
        %v1146 = vrot.slane %v1138, %v1145
        %v1148 = vunpack.c.l.s4 1983009808
        %v1149 = vunpack.c.0.s8 %v1148
        %v1150 = vlaneseq
        %v1151 = vshrl.u32 %v1150, 7
        %v1152 = vsub.s32 %v1149, %v1151
        %v1153 = vrot.slane %v1139, %v1152
        %v1154 = vcombine.low %v738, %v739
        %v1155 = vcombine.high %v738, %v739
        %v1157 = vunpack.c.l.s4 1983009808
        %v1158 = vunpack.c.0.s8 %v1157
        %v1159 = vlaneseq
        %v1160 = vshrl.u32 %v1159, 7
        %v1161 = vsub.s32 %v1158, %v1160
        %v1162 = vrot.slane %v1154, %v1161
        %v1164 = vunpack.c.l.s4 1983009808
        %v1165 = vunpack.c.0.s8 %v1164
        %v1166 = vlaneseq
        %v1167 = vshrl.u32 %v1166, 7
        %v1168 = vsub.s32 %v1165, %v1167
        %v1169 = vrot.slane %v1155, %v1168
        %v1170 = vcombine.low %v975, %v983
        %v1171 = vcombine.high %v975, %v983
        %v1173 = vunpack.c.l.s4 1983009808
        %v1174 = vunpack.c.0.s8 %v1173
        %v1175 = vlaneseq
        %v1176 = vshrl.u32 %v1175, 7
        %v1177 = vsub.s32 %v1174, %v1176
        %v1178 = vrot.slane %v1170, %v1177
        %v1180 = vunpack.c.l.s4 1983009808
        %v1181 = vunpack.c.0.s8 %v1180
        %v1182 = vlaneseq
        %v1183 = vshrl.u32 %v1182, 7
        %v1184 = vsub.s32 %v1181, %v1183
        %v1185 = vrot.slane %v1171, %v1184
        %v1186 = vcombine.low %v1130, %v1146
        %v1187 = vcombine.high %v1130, %v1146
        %v1189 = vunpack.c.l.s4 1934713408
        %v1190 = vunpack.c.0.s8 %v1189
        %v1191 = vlaneseq
        %v1192 = vshrl.u32 %v1191, 7
        %v1193 = vsub.s32 %v1190, %v1192
        %v1194 = vrot.slane %v1186, %v1193
        %v1196 = vunpack.c.l.s4 1934713408
        %v1197 = vunpack.c.0.s8 %v1196
        %v1198 = vlaneseq
        %v1199 = vshrl.u32 %v1198, 7
        %v1200 = vsub.s32 %v1197, %v1199
        %v1201 = vrot.slane %v1187, %v1200
        %v1202 = vcombine.low %v1137, %v1153
        %v1203 = vcombine.high %v1137, %v1153
        %v1205 = vunpack.c.l.s4 1934713408
        %v1206 = vunpack.c.0.s8 %v1205
        %v1207 = vlaneseq
        %v1208 = vshrl.u32 %v1207, 7
        %v1209 = vsub.s32 %v1206, %v1208
        %v1210 = vrot.slane %v1202, %v1209
        %v1212 = vunpack.c.l.s4 1934713408
        %v1213 = vunpack.c.0.s8 %v1212
        %v1214 = vlaneseq
        %v1215 = vshrl.u32 %v1214, 7
        %v1216 = vsub.s32 %v1213, %v1215
        %v1217 = vrot.slane %v1203, %v1216
        %v1218 = vcombine.low %v1162, %v1178
        %v1219 = vcombine.high %v1162, %v1178
        %v1221 = vunpack.c.l.s4 1934713408
        %v1222 = vunpack.c.0.s8 %v1221
        %v1223 = vlaneseq
        %v1224 = vshrl.u32 %v1223, 7
        %v1225 = vsub.s32 %v1222, %v1224
        %v1226 = vrot.slane %v1218, %v1225
        %v1228 = vunpack.c.l.s4 1934713408
        %v1229 = vunpack.c.0.s8 %v1228
        %v1230 = vlaneseq
        %v1231 = vshrl.u32 %v1230, 7
        %v1232 = vsub.s32 %v1229, %v1231
        %v1233 = vrot.slane %v1219, %v1232
        %v1234 = vcombine.low %v1169, %v1185
        %v1235 = vcombine.high %v1169, %v1185
        %v1237 = vunpack.c.l.s4 1934713408
        %v1238 = vunpack.c.0.s8 %v1237
        %v1239 = vlaneseq
        %v1240 = vshrl.u32 %v1239, 7
        %v1241 = vsub.s32 %v1238, %v1240
        %v1242 = vrot.slane %v1234, %v1241
        %v1244 = vunpack.c.l.s4 1934713408
        %v1245 = vunpack.c.0.s8 %v1244
        %v1246 = vlaneseq
        %v1247 = vshrl.u32 %v1246, 7
        %v1248 = vsub.s32 %v1245, %v1247
        %v1249 = vrot.slane %v1235, %v1248
        %v1250 = vcombine.low %v1194, %v1226
        %v1251 = vcombine.high %v1194, %v1226
        %v1252 = vcombine.low %v1201, %v1233
        %v1253 = vcombine.high %v1201, %v1233
        %v1254 = vcombine.low %v1210, %v1242
        %v1255 = vcombine.high %v1210, %v1242
        %v1256 = vcombine.low %v1217, %v1249
        %v1257 = vcombine.high %v1217, %v1249
        %vm1258 = vcmask 523264
        %v1259 = vsel %vm1258, %v1114, -inf
        %1260 = vmax.xlane.f32.xlu0 %v1259
        %v1261 = vpop.xlane.xlu0 %1260
        %v1262 = vsel %vm1258, %v1115, -inf
        %1263 = vmax.xlane.f32.xlu0 %v1262
        %v1264 = vpop.xlane.xlu0 %1263
        %v1265 = vsel %vm1258, %v1116, -inf
        %1266 = vmax.xlane.f32.xlu0 %v1265
        %v1267 = vpop.xlane.xlu0 %1266
        %v1268 = vsel %vm1258, %v1117, -inf
        %1269 = vmax.xlane.f32.xlu0 %v1268
        %v1270 = vpop.xlane.xlu0 %1269
        %v1271 = vsel %vm1258, %v1118, -inf
        %1272 = vmax.xlane.f32.xlu0 %v1271
        %v1273 = vpop.xlane.xlu0 %1272
        %v1274 = vsel %vm1258, %v1119, -inf
        %1275 = vmax.xlane.f32.xlu0 %v1274
        %v1276 = vpop.xlane.xlu0 %1275
        %v1277 = vsel %vm1258, %v1120, -inf
        %1278 = vmax.xlane.f32.xlu0 %v1277
        %v1279 = vpop.xlane.xlu0 %1278
        %v1280 = vsel %vm1258, %v1121, -inf
        %1281 = vmax.xlane.f32.xlu0 %v1280
        %v1282 = vpop.xlane.xlu0 %1281
        %v1283 = vsel %vm1258, %v1250, -inf
        %1284 = vmax.xlane.f32.xlu0 %v1283
        %v1285 = vpop.xlane.xlu0 %1284
        %v1286 = vsel %vm1258, %v1251, -inf
        %1287 = vmax.xlane.f32.xlu0 %v1286
        %v1288 = vpop.xlane.xlu0 %1287
        %v1289 = vsel %vm1258, %v1252, -inf
        %1290 = vmax.xlane.f32.xlu0 %v1289
        %v1291 = vpop.xlane.xlu0 %1290
        %v1292 = vsel %vm1258, %v1253, -inf
        %1293 = vmax.xlane.f32.xlu0 %v1292
        %v1294 = vpop.xlane.xlu0 %1293
        %v1295 = vsel %vm1258, %v1254, -inf
        %1296 = vmax.xlane.f32.xlu0 %v1295
        %v1297 = vpop.xlane.xlu0 %1296
        %v1298 = vsel %vm1258, %v1255, -inf
        %1299 = vmax.xlane.f32.xlu0 %v1298
        %v1300 = vpop.xlane.xlu0 %1299
        %v1301 = vsel %vm1258, %v1256, -inf
        %1302 = vmax.xlane.f32.xlu0 %v1301
        %v1303 = vpop.xlane.xlu0 %1302
        %v1304 = vsel %vm1258, %v1257, -inf
        %1305 = vmax.xlane.f32.xlu0 %v1304
        %v1306 = vpop.xlane.xlu0 %1305
        %v1307 = vld [vmem:[%s3] sm:$0xff]
        %v1308 = vld [vmem:[%s4] sm:$0xff]
        %v1325 = vlaneseq
        %v1326 = vand.u32 %v1325, 127
        %v1327 = vlaneseq
        %v1328 = vshrl.u32 %v1327, 7
        %v1329 = vsub.s32 %v1326, %v1328
        %v1330 = vrot.slane %v1261, %v1329
        %v1331 = vlaneseq
        %v1332 = vshrl.u32 %v1331, 7
        %v1333 = vsub.s32 %v1326, %v1332
        %v1334 = vrot.slane %v1264, %v1333
        %v1335 = vlaneseq
        %v1336 = vshrl.u32 %v1335, 7
        %v1337 = vsub.s32 %v1326, %v1336
        %v1338 = vrot.slane %v1267, %v1337
        %v1339 = vlaneseq
        %v1340 = vshrl.u32 %v1339, 7
        %v1341 = vsub.s32 %v1326, %v1340
        %v1342 = vrot.slane %v1270, %v1341
        %v1343 = vlaneseq
        %v1344 = vshrl.u32 %v1343, 7
        %v1345 = vsub.s32 %v1326, %v1344
        %v1346 = vrot.slane %v1273, %v1345
        %v1347 = vlaneseq
        %v1348 = vshrl.u32 %v1347, 7
        %v1349 = vsub.s32 %v1326, %v1348
        %v1350 = vrot.slane %v1276, %v1349
        %v1351 = vlaneseq
        %v1352 = vshrl.u32 %v1351, 7
        %v1353 = vsub.s32 %v1326, %v1352
        %v1354 = vrot.slane %v1279, %v1353
        %v1355 = vlaneseq
        %v1356 = vshrl.u32 %v1355, 7
        %v1357 = vsub.s32 %v1326, %v1356
        %v1358 = vrot.slane %v1282, %v1357
        %v1359 = vlaneseq
        %v1360 = vshrl.u32 %v1359, 7
        %v1361 = vsub.s32 %v1326, %v1360
        %v1362 = vrot.slane %v1285, %v1361
        %v1363 = vlaneseq
        %v1364 = vshrl.u32 %v1363, 7
        %v1365 = vsub.s32 %v1326, %v1364
        %v1366 = vrot.slane %v1288, %v1365
        %v1367 = vlaneseq
        %v1368 = vshrl.u32 %v1367, 7
        %v1369 = vsub.s32 %v1326, %v1368
        %v1370 = vrot.slane %v1291, %v1369
        %v1371 = vlaneseq
        %v1372 = vshrl.u32 %v1371, 7
        %v1373 = vsub.s32 %v1326, %v1372
        %v1374 = vrot.slane %v1294, %v1373
        %v1375 = vlaneseq
        %v1376 = vshrl.u32 %v1375, 7
        %v1377 = vsub.s32 %v1326, %v1376
        %v1378 = vrot.slane %v1297, %v1377
        %v1379 = vlaneseq
        %v1380 = vshrl.u32 %v1379, 7
        %v1381 = vsub.s32 %v1326, %v1380
        %v1382 = vrot.slane %v1300, %v1381
        %v1383 = vlaneseq
        %v1384 = vshrl.u32 %v1383, 7
        %v1385 = vsub.s32 %v1326, %v1384
        %v1386 = vrot.slane %v1303, %v1385
        %v1387 = vlaneseq
        %v1388 = vshrl.u32 %v1387, 7
        %v1389 = vsub.s32 %v1326, %v1388
        %v1390 = vrot.slane %v1306, %v1389
        %vm1391 = vcmask 1041409
        %v1392 = vsel %vm1391, %v1334, %v1330
        %vm1393 = vcmask 1042434
        %v1394 = vsel %vm1393, %v1338, %v1392
        %vm1395 = vcmask 1043459
        %v1396 = vsel %vm1395, %v1342, %v1394
        %vm1397 = vcmask 1044484
        %v1398 = vsel %vm1397, %v1346, %v1396
        %vm1399 = vcmask 1045509
        %v1400 = vsel %vm1399, %v1350, %v1398
        %vm1401 = vcmask 1046534
        %v1402 = vsel %vm1401, %v1354, %v1400
        %vm1403 = vcmask 1047559
        %v1404 = vsel %vm1403, %v1358, %v1402
        %v1405 = vsel %vm1391, %v1366, %v1362
        %v1406 = vsel %vm1393, %v1370, %v1405
        %v1407 = vsel %vm1395, %v1374, %v1406
        %v1408 = vsel %vm1397, %v1378, %v1407
        %v1409 = vsel %vm1399, %v1382, %v1408
        %v1410 = vsel %vm1401, %v1386, %v1409
        %v1411 = vsel %vm1403, %v1390, %v1410
        %v1415 = vsel %vm354, %v1308, 0
        %1417 = vmatprep.subr.mxu0 0.0
        %1418 = vmatpush1.msra.mxu0 %v1404
        %1419 = vmatprep.subr.mxu0 0.0
        %1420 = vmatpush1.msra.mxu0 %v1411
        %1421 = vmatprep.subr.mxu0 0.0
        %1422 = vmatpush1.msra.mxu0 0.0
        %1423 = vmatprep.subr.mxu0 0.0
        %1424 = vmatpush1.msra.mxu0 0.0
        %1425 = vmatprep.subr.mxu0 0.0
        %1426 = vmatpush1.msra.mxu0 0.0
        %1427 = vmatprep.subr.mxu0 0.0
        %1428 = vmatpush1.msra.mxu0 0.0
        %1429 = vmatprep.subr.mxu0 0.0
        %1430 = vmatpush1.msra.mxu0 0.0
        %1431 = vmatprep.subr.mxu0 0.0
        %1432 = vmatpush1.msra.mxu0 0.0
        %1433 = vmatprep.subr.mxu0 0.0
        %1434 = vmatpush1.msra.mxu0 0.0
        %1435 = vmatprep.subr.mxu0 0.0
        %1436 = vmatpush1.msra.mxu0 0.0
        %1437 = vmatprep.subr.mxu0 0.0
        %1438 = vmatpush1.msra.mxu0 0.0
        %1439 = vmatprep.subr.mxu0 0.0
        %1440 = vmatpush1.msra.mxu0 0.0
        %1441 = vmatprep.subr.mxu0 0.0
        %1442 = vmatpush1.msra.mxu0 0.0
        %1443 = vmatprep.subr.mxu0 0.0
        %1444 = vmatpush1.msra.mxu0 0.0
        %1445 = vmatprep.subr.mxu0 0.0
        %1446 = vmatpush1.msra.mxu0 0.0
        %1447 = vmatprep.subr.mxu0 0.0
        %1448 = vmatpush1.msra.mxu0 0.0
        %1449 = vmatprep.subr.mxu0 0.0
        %1450 = vmatpush1.msra.mxu0 0.0
        %1451 = vmatprep.subr.mxu0 0.0
        %1452 = vmatpush1.msra.mxu0 0.0
        %1453 = vmatprep.subr.mxu0 0.0
        %1454 = vmatpush1.msra.mxu0 0.0
        %1455 = vmatprep.subr.mxu0 0.0
        %1456 = vmatpush1.msra.mxu0 0.0
        %1457 = vmatprep.subr.mxu0 0.0
        %1458 = vmatpush1.msra.mxu0 0.0
        %1459 = vmatprep.subr.mxu0 0.0
        %1460 = vmatpush1.msra.mxu0 0.0
        %1461 = vmatprep.subr.mxu0 0.0
        %1462 = vmatpush1.msra.mxu0 0.0
        %1463 = vmatprep.subr.mxu0 0.0
        %1464 = vmatpush1.msra.mxu0 0.0
        %1465 = vmatprep.subr.mxu0 0.0
        %1466 = vmatpush1.msra.mxu0 0.0
        %1467 = vmatprep.subr.mxu0 0.0
        %1468 = vmatpush1.msra.mxu0 0.0
        %1469 = vmatprep.subr.mxu0 0.0
        %1470 = vmatpush1.msra.mxu0 0.0
        %1471 = vmatprep.subr.mxu0 0.0
        %1472 = vmatpush1.msra.mxu0 0.0
        %1473 = vmatprep.subr.mxu0 0.0
        %1474 = vmatpush1.msra.mxu0 0.0
        %1475 = vmatprep.subr.mxu0 0.0
        %1476 = vmatpush1.msra.mxu0 0.0
        %1477 = vmatprep.subr.mxu0 0.0
        %1478 = vmatpush1.msra.mxu0 0.0
        %1479 = vmatprep.subr.mxu0 0.0
        %1480 = vmatpush1.msra.mxu0 0.0
        %1481 = vmatprep.mubr.f32.mxu0 0.0
        %1482 = vmatmul.mubr.f32.gmra.mrb[0].mxu0 %v1415
        %v1483 = vpop.f32.mrb[0].mxu0
        %v1484 = vadd.f32 0.0, %v1483
        %v1485 = vpop.f32.mrb[0].mxu0
        %1486 = vdwg.mxu0
        %v1488 = vsel %vm354, %v1307, 0
        %1490 = vmatprep.subr.mxu0 0.0
        %1491 = vmatpush1.msra.mxu0 %v946
        %1492 = vmatprep.subr.mxu0 0.0
        %1493 = vmatpush1.msra.mxu0 %v951
        %1494 = vmatprep.subr.mxu0 0.0
        %1495 = vmatpush1.msra.mxu0 0.0
        %1496 = vmatprep.subr.mxu0 0.0
        %1497 = vmatpush1.msra.mxu0 0.0
        %1498 = vmatprep.subr.mxu0 0.0
        %1499 = vmatpush1.msra.mxu0 0.0
        %1500 = vmatprep.subr.mxu0 0.0
        %1501 = vmatpush1.msra.mxu0 0.0
        %1502 = vmatprep.subr.mxu0 0.0
        %1503 = vmatpush1.msra.mxu0 0.0
        %1504 = vmatprep.subr.mxu0 0.0
        %1505 = vmatpush1.msra.mxu0 0.0
        %1506 = vmatprep.subr.mxu0 0.0
        %1507 = vmatpush1.msra.mxu0 0.0
        %1508 = vmatprep.subr.mxu0 0.0
        %1509 = vmatpush1.msra.mxu0 0.0
        %1510 = vmatprep.subr.mxu0 0.0
        %1511 = vmatpush1.msra.mxu0 0.0
        %1512 = vmatprep.subr.mxu0 0.0
        %1513 = vmatpush1.msra.mxu0 0.0
        %1514 = vmatprep.subr.mxu0 0.0
        %1515 = vmatpush1.msra.mxu0 0.0
        %1516 = vmatprep.subr.mxu0 0.0
        %1517 = vmatpush1.msra.mxu0 0.0
        %1518 = vmatprep.subr.mxu0 0.0
        %1519 = vmatpush1.msra.mxu0 0.0
        %1520 = vmatprep.subr.mxu0 0.0
        %1521 = vmatpush1.msra.mxu0 0.0
        %1522 = vmatprep.subr.mxu0 0.0
        %1523 = vmatpush1.msra.mxu0 0.0
        %1524 = vmatprep.subr.mxu0 0.0
        %1525 = vmatpush1.msra.mxu0 0.0
        %1526 = vmatprep.subr.mxu0 0.0
        %1527 = vmatpush1.msra.mxu0 0.0
        %1528 = vmatprep.subr.mxu0 0.0
        %1529 = vmatpush1.msra.mxu0 0.0
        %1530 = vmatprep.subr.mxu0 0.0
        %1531 = vmatpush1.msra.mxu0 0.0
        %1532 = vmatprep.subr.mxu0 0.0
        %1533 = vmatpush1.msra.mxu0 0.0
        %1534 = vmatprep.subr.mxu0 0.0
        %1535 = vmatpush1.msra.mxu0 0.0
        %1536 = vmatprep.subr.mxu0 0.0
        %1537 = vmatpush1.msra.mxu0 0.0
        %1538 = vmatprep.subr.mxu0 0.0
        %1539 = vmatpush1.msra.mxu0 0.0
        %1540 = vmatprep.subr.mxu0 0.0
        %1541 = vmatpush1.msra.mxu0 0.0
        %1542 = vmatprep.subr.mxu0 0.0
        %1543 = vmatpush1.msra.mxu0 0.0
        %1544 = vmatprep.subr.mxu0 0.0
        %1545 = vmatpush1.msra.mxu0 0.0
        %1546 = vmatprep.subr.mxu0 0.0
        %1547 = vmatpush1.msra.mxu0 0.0
        %1548 = vmatprep.subr.mxu0 0.0
        %1549 = vmatpush1.msra.mxu0 0.0
        %1550 = vmatprep.subr.mxu0 0.0
        %1551 = vmatpush1.msra.mxu0 0.0
        %1552 = vmatprep.subr.mxu0 0.0
        %1553 = vmatpush1.msra.mxu0 0.0
        %1554 = vmatprep.mubr.f32.mxu0 0.0
        %1555 = vmatmul.mubr.f32.gmra.mrb[0].mxu0 %v1488
        %v1556 = vpop.f32.mrb[0].mxu0
        %v1557 = vadd.f32 %v1484, %v1556
        %v1558 = vpop.f32.mrb[0].mxu0
        %1559 = vdwg.mxu0
        %1560 = vset.pattern.permute.xlu0 2
        %1561 = vperm.xlu0 %1560, %v347
        %v1562 = vpop.permute.xlu0 %1561
        %v1564 = vadd.f32 %v1557, %v1562
        %v1565 = vxor.u32 %v1564, 2147483648
        %v1566 = vmul.f32 %v1565, 1.442695
        %v1567 = vpow.pop %v1566
        %v1568 = vadd.f32 %v1567, 1.0
        %v1569 = vrcp.pop %v1568
        %v1570 = vmul.f32 1.0, %v1569
        %v1571 = vmul.f32 %v1564, %v1570
        %v1572 = vld [vmem:[%s5] sm:$0xf]
        %1573 = vset.pattern.permute.xlu0 3
        %1574 = vperm.xlu0 %1573, %v347
        %v1575 = vpop.permute.xlu0 %1574
        %vm1577 = vcmask 64512
        %v1579 = vsel %vm1577, %v1572, 0
        %1581 = vmatprep.subr.mxu0 0.0
        %1582 = vmatpush1.msra.mxu0 %v1571
        %1583 = vmatprep.subr.mxu0 0.0
        %1584 = vmatpush1.msra.mxu0 0.0
        %1585 = vmatprep.subr.mxu0 0.0
        %1586 = vmatpush1.msra.mxu0 0.0
        %1587 = vmatprep.subr.mxu0 0.0
        %1588 = vmatpush1.msra.mxu0 0.0
        %1589 = vmatprep.subr.mxu0 0.0
        %1590 = vmatpush1.msra.mxu0 0.0
        %1591 = vmatprep.subr.mxu0 0.0
        %1592 = vmatpush1.msra.mxu0 0.0
        %1593 = vmatprep.subr.mxu0 0.0
        %1594 = vmatpush1.msra.mxu0 0.0
        %1595 = vmatprep.subr.mxu0 0.0
        %1596 = vmatpush1.msra.mxu0 0.0
        %1597 = vmatprep.subr.mxu0 0.0
        %1598 = vmatpush1.msra.mxu0 0.0
        %1599 = vmatprep.subr.mxu0 0.0
        %1600 = vmatpush1.msra.mxu0 0.0
        %1601 = vmatprep.subr.mxu0 0.0
        %1602 = vmatpush1.msra.mxu0 0.0
        %1603 = vmatprep.subr.mxu0 0.0
        %1604 = vmatpush1.msra.mxu0 0.0
        %1605 = vmatprep.subr.mxu0 0.0
        %1606 = vmatpush1.msra.mxu0 0.0
        %1607 = vmatprep.subr.mxu0 0.0
        %1608 = vmatpush1.msra.mxu0 0.0
        %1609 = vmatprep.subr.mxu0 0.0
        %1610 = vmatpush1.msra.mxu0 0.0
        %1611 = vmatprep.subr.mxu0 0.0
        %1612 = vmatpush1.msra.mxu0 0.0
        %1613 = vmatprep.subr.mxu0 0.0
        %1614 = vmatpush1.msra.mxu0 0.0
        %1615 = vmatprep.subr.mxu0 0.0
        %1616 = vmatpush1.msra.mxu0 0.0
        %1617 = vmatprep.subr.mxu0 0.0
        %1618 = vmatpush1.msra.mxu0 0.0
        %1619 = vmatprep.subr.mxu0 0.0
        %1620 = vmatpush1.msra.mxu0 0.0
        %1621 = vmatprep.subr.mxu0 0.0
        %1622 = vmatpush1.msra.mxu0 0.0
        %1623 = vmatprep.subr.mxu0 0.0
        %1624 = vmatpush1.msra.mxu0 0.0
        %1625 = vmatprep.subr.mxu0 0.0
        %1626 = vmatpush1.msra.mxu0 0.0
        %1627 = vmatprep.subr.mxu0 0.0
        %1628 = vmatpush1.msra.mxu0 0.0
        %1629 = vmatprep.subr.mxu0 0.0
        %1630 = vmatpush1.msra.mxu0 0.0
        %1631 = vmatprep.subr.mxu0 0.0
        %1632 = vmatpush1.msra.mxu0 0.0
        %1633 = vmatprep.subr.mxu0 0.0
        %1634 = vmatpush1.msra.mxu0 0.0
        %1635 = vmatprep.subr.mxu0 0.0
        %1636 = vmatpush1.msra.mxu0 0.0
        %1637 = vmatprep.subr.mxu0 0.0
        %1638 = vmatpush1.msra.mxu0 0.0
        %1639 = vmatprep.subr.mxu0 0.0
        %1640 = vmatpush1.msra.mxu0 0.0
        %1641 = vmatprep.subr.mxu0 0.0
        %1642 = vmatpush1.msra.mxu0 0.0
        %1643 = vmatprep.subr.mxu0 0.0
        %1644 = vmatpush1.msra.mxu0 0.0
        %1645 = vmatprep.mubr.f32.mxu0 0.0
        %1646 = vmatmul.mubr.f32.gmra.mrb[0].mxu0 %v1579
        %v1647 = vpop.f32.mrb[0].mxu0
        %v1648 = vadd.f32 %v1575, %v1647
        %v1649 = vpop.f32.mrb[0].mxu0
        %1650 = vdwg.mxu0
        %1651 = vxpose.xlu0.b32.start [1/16] %v1648, 128
        %1652 = vxpose.xlu0.b32.cont [2/16] 0.0, 128
        %1653 = vxpose.xlu0.b32.cont [3/16] 0.0, 128
        %1654 = vxpose.xlu0.b32.cont [4/16] 0.0, 128
        %1655 = vxpose.xlu0.b32.cont [5/16] 0.0, 128
        %1656 = vxpose.xlu0.b32.cont [6/16] 0.0, 128
        %1657 = vxpose.xlu0.b32.cont [7/16] 0.0, 128
        %1658 = vxpose.xlu0.b32.cont [8/16] 0.0, 128
        %1659 = vxpose.xlu0.b32.cont [9/16] 0.0, 128
        %1660 = vxpose.xlu0.b32.cont [10/16] 0.0, 128
        %1661 = vxpose.xlu0.b32.cont [11/16] 0.0, 128
        %1662 = vxpose.xlu0.b32.cont [12/16] 0.0, 128
        %1663 = vxpose.xlu0.b32.cont [13/16] 0.0, 128
        %1664 = vxpose.xlu0.b32.cont [14/16] 0.0, 128
        %1665 = vxpose.xlu0.b32.cont [15/16] 0.0, 128
        %1666 = vxpose.xlu0.b32.end [16/16] 0.0, 128
        %v1667 = vpop.trf.xlu0
        %v1668 = vpop.trf.xlu0
        %v1669 = vpop.trf.xlu0
        %v1670 = vpop.trf.xlu0
        %v1671 = vpop.trf.xlu0
        %v1672 = vpop.trf.xlu0
        %v1673 = vpop.trf.xlu0
        %v1674 = vpop.trf.xlu0
        %v1675 = vpop.trf.xlu0
        %v1676 = vpop.trf.xlu0
        %v1677 = vpop.trf.xlu0
        %v1678 = vpop.trf.xlu0
        %v1679 = vpop.trf.xlu0
        %v1680 = vpop.trf.xlu0
        %v1681 = vpop.trf.xlu0
        %v1682 = vpop.trf.xlu0
        %v1683 = vsel %vm533, %v1667, -inf
        %1684 = vmax.xlane.f32.xlu0 %v1683
        %v1685 = vpop.xlane.xlu0 %1684
        %v1686 = vsub.f32 %v1667, %v1685
        %v1687 = vmul.f32 %v1686, 1.442695
        %v1688 = vpow.pop %v1687
        %v1689 = vsel %vm533, %v1688, 0.0
        %1690 = vadd.xlane.f32.xlu0 %v1689
        %v1691 = vpop.xlane.xlu0 %1690
        %v1692 = vrcp.pop %v1691
        %v1693 = vmul.f32 %v1688, %v1692
        %1694 = vst.msk [vmem:[%s338] sm:$0xff] %vm533, %v1693
        %p1695 = scmp.lt.s32.totalorder %s19, 1
        %s1696 = scalar_select %p1695, %s19, 1
        %s1697 = smul.addr %s1696, 8
        %s1698 = scalar_lea.vmem %s8, %s1697
        // Predicated region
        $region76: #{tpu_custom_call.1} parent=70 // pred_check
          %p1699 = pneg %p210
        $region77: #{tpu_custom_call.1} parent=70 // pred_check_branch
          %1701 = sbr.rel (%p1699) target = $region79
        $region78: #{tpu_custom_call.1} parent=70 // pred_region
          _
        $region79: #{tpu_custom_call.1} parent=70 // pred_fallthru
          _
      $region71: #{tpu_custom_call.1} parent=5 // pred_fallthru
        _
      %p1702 = scmp.le.s32.totalorder 2, %s14
      // Predicated region
      $region80: #{tpu_custom_call.1} parent=5 // pred_check
        %p1703 = pneg %p1702
      $region81: #{tpu_custom_call.1} parent=5 // pred_check_branch
        %1705 = sbr.rel (%p1703) target = $region83
      $region82: #{tpu_custom_call.1} parent=5 // pred_region
        %s1706 = ssub.s32 %s14, 2
        // Predicated region
        $region84: #{tpu_custom_call.1} parent=82 // pred_check
          %p1707 = pneg %p216
        $region85: #{tpu_custom_call.1} parent=82 // pred_check_branch
          %1709 = sbr.rel (%p1707) target = $region87
        $region86: #{tpu_custom_call.1} parent=82 // pred_region
          %p1710 = scmp.lt.s32.totalorder %s20, 1
          %s1711 = scalar_select %p1710, %s20, 1
          %s1712 = smul.addr %s1711, 8
          %s1713 = scalar_lea.vmem %s8, %s1712
        $region87: #{tpu_custom_call.1} parent=82 // pred_fallthru
          _
      $region83: #{tpu_custom_call.1} parent=5 // pred_fallthru
        _
    $region6: #{tpu_custom_call.1} parent=1 // loop_footer
      %s18 = sadd.s32 1, %s14
    $region7: #{tpu_custom_call.1} parent=1 // loop_footer_branch
      %13 = sbr.rel target = $region3
    $region8: #{tpu_custom_call.1} parent=1 // loop_exit
      _

</llo_original>
